<compile_context>
chip_gen: v6e
topology: v6e:2x2x1
jax: 0.10.0
libtpu: 0.0.40
codegen_flags: <defaults>
</compile_context>

<pallas_src>
import functools
import math

import numpy as np
import jax
import jax.numpy as jnp
from jax import lax
from jax.experimental import pallas as pl
from jax.experimental.pallas import tpu as pltpu

OUT_PAD = 128  # lane-dense padded width of the 2-wide final output


def _relevant_token_attention_kernel(
    x_ref,      # (TB, N, D)    TB batch elements per grid step (source dtype)
    cst_ref,    # (3, D)        rows: [scorer weight ; LN gamma ; LN beta]
    kvw_ref,    # (D, Dq)       kv weight, stored as W^T (in, out)
    kvb_ref,    # (1, Dq)       kv bias
    biasT_ref,  # (N, N)        relative-position bias table, TRANSPOSED: [n, sel]
    fcw_ref,    # (D, OUT_PAD)  fc_final W^T, zero-padded from (D, 2)
    fcb_ref,    # (1, OUT_PAD)  fc_final bias, zero-padded from (1, 2)
    o_ref,      # (TB, OUT_PAD) per-step output block (lane-dense full store)
    *,
    mxu_dtype,  # static: jnp.float32 or jnp.bfloat16 for MXU matmul operands
):
    TB, N, D = x_ref.shape
    Dq = kvw_ref.shape[1]
    M = TB * N
    eps = 1e-5

    x3 = x_ref[...].astype(jnp.float32)   # (TB, N, D) f32 working copy
    xf = x3.reshape(M, D)                 # (M, D) leading-dim merge (layout free)

    sw = cst_ref[0:1, :]                  # (1, D) scorer weight
    lng = cst_ref[1:2, :]                 # (1, D) LN gamma
    lnb = cst_ref[2:3, :]                 # (1, D) LN beta

    # ---- token selector: linear scorer + per-batch first-argmax (eval path) ----
    # The scorer bias adds the same constant to every logit, so argmax (and the
    # training-mode Categorical) is invariant to it; it is not needed here.
    logits = jnp.sum(xf * sw, axis=-1, keepdims=True)               # (M, 1)
    logits3 = logits.reshape(TB, N, 1)
    iota_sub = lax.broadcasted_iota(jnp.int32, (TB, N, 1), 1)
    mx = jnp.max(logits3, axis=1, keepdims=True)                    # (TB, 1, 1)
    sel_idx = jnp.min(jnp.where(logits3 == mx, iota_sub, N),
                      axis=1, keepdims=True)                        # (TB, 1, 1) first argmax
    onehot_sub = (iota_sub == sel_idx).astype(jnp.float32)          # (TB, N, 1)
    selected = jnp.sum(x3 * onehot_sub, axis=1)                     # (TB, D)

    # ---- LayerNorm over the (M, D) token slab only (no concatenate) ----
    mu = jnp.mean(xf, axis=-1, keepdims=True)
    var = jnp.mean((xf - mu) ** 2, axis=-1, keepdims=True)
    xnorm = (xf - mu) * lax.rsqrt(var + eps) * lng + lnb            # (M, D)

    # ---- kv projection: ONE (M, D) x (D, Dq) MXU matmul ----
    keys_flat = jnp.dot(xnorm.astype(mxu_dtype), kvw_ref[...],
                        preferred_element_type=jnp.float32) + kvb_ref[...]
    keys = keys_flat.reshape(TB, N, Dq)                             # (TB, N, Dq)

    # query = kv(ln(selected)) == gathered row of keys (bias already added);
    # fold 1/sqrt(Dq) into the query instead of scaling every score.
    query = (jnp.sum(keys * onehot_sub, axis=1)
             * jnp.float32(1.0 / math.sqrt(Dq)))                    # (TB, Dq)

    # ---- attention scores: VPU broadcast-mul + lane reduce ----
    scores = jnp.sum(keys * query.reshape(TB, 1, Dq),
                     axis=-1, keepdims=True)                        # (TB, N, 1)

    # relative-position bias row gather: bias[sel, n] == biasT[n, sel]
    iota_lane = lax.broadcasted_iota(jnp.int32, (TB, 1, N), 2)
    onehot_lane = (iota_lane == sel_idx).astype(jnp.float32)        # (TB, 1, N)
    bias_rows = jnp.sum(biasT_ref[...][None, :, :] * onehot_lane,
                        axis=-1, keepdims=True)                     # (TB, N, 1)
    attn = scores + bias_rows

    # ---- softmax over tokens (sublane axis); reciprocal on the idle EUP slot ----
    m = jnp.max(attn, axis=1, keepdims=True)
    e = jnp.exp(attn - m)
    p = e * pl.reciprocal(jnp.sum(e, axis=1, keepdims=True), approx=True)  # (TB, N, 1)

    # ---- weighted sum + residual + final fc (lane-dense, padded to OUT_PAD) ----
    xnorm3 = xnorm.reshape(TB, N, D)
    y = jnp.sum(p * xnorm3, axis=1) + selected                      # (TB, D)
    out = jnp.dot(y.astype(mxu_dtype), fcw_ref[...],
                  preferred_element_type=jnp.float32) + fcb_ref[...]
    o_ref[...] = out                                                # full (TB, 128) vst


def make_relative_indexes(window_x, window_y):
    """Mirror RelevantTokenAttention.create_positional_biases (numpy, static)."""
    mesh = np.meshgrid(range(window_x), range(window_y))
    indices = np.array([np.array([a, b]) for a, b in
                        zip(mesh[0].flatten(), mesh[1].flatten())])
    pos_dict = {}
    relative_positions = indices[np.newaxis, :] - indices[:, np.newaxis]
    rel_idx = []
    for pos in relative_positions.reshape(-1, 2):
        pos = (int(pos[0]), int(pos[1]))
        if pos not in pos_dict:
            pos_dict[pos] = len(pos_dict)
        rel_idx.append(pos_dict[pos])
    n_tok = window_x * window_y
    return np.array(rel_idx, dtype=np.int32).reshape(n_tok, n_tok), len(pos_dict)


def init_params(key, window_x, window_y, token_dim, qv_dim):
    N = window_x * window_y
    ks = jax.random.split(key, 6)
    sw = jax.random.normal(ks[0], (1, token_dim), jnp.float32) * 0.02
    sb = jnp.zeros((1, 1), jnp.float32)          # kept for fidelity; argmax-invariant
    lng = jnp.ones((1, token_dim), jnp.float32)
    lnb = jnp.zeros((1, token_dim), jnp.float32)
    kvw = jax.random.normal(ks[1], (token_dim, qv_dim), jnp.float32) * 0.02   # W^T
    kvb = jax.random.normal(ks[2], (1, qv_dim), jnp.float32) * 0.02
    fcw = jax.random.normal(ks[3], (token_dim, 2), jnp.float32) * 0.02        # W^T
    fcb = jax.random.normal(ks[4], (1, 2), jnp.float32) * 0.02
    rel_idx, n_unique = make_relative_indexes(window_x, window_y)
    # (module inits unique_bias_param to zeros; use small random values so the
    #  bias-gather path is actually exercised -- synthetic weights anyway)
    unique_bias = jax.random.normal(ks[5], (n_unique,), jnp.float32) * 0.02
    bias_table = unique_bias[jnp.asarray(rel_idx)]                            # (N, N)
    return dict(sw=sw, sb=sb, lng=lng, lnb=lnb, kvw=kvw, kvb=kvb,
                bias_table=bias_table, fcw=fcw, fcb=fcb)


def _auto_tb(B, tb_max=32):
    """Pick batches-per-step: as large as possible up to tb_max while keeping
    the grid length >= 2 (so v7x can shard the parallel axis over both TCs)."""
    tb = tb_max
    while tb > 1 and B < 2 * tb:
        tb //= 2
    return max(tb, 1)


def relevant_token_attention(x, params, *, tb=None, matmul_bf16=True):
    """Eval-mode forward of RelevantTokenAttention as one Pallas TPU kernel.

    tb:          batch elements per grid step.  None -> auto (up to 32, capped
                 so the grid keeps >= 2 steps).  Per-step VMEM is roughly
                 tb * (2x double-buffered x tile + ~5x f32 intermediates)
                 ~= tb * 56 KiB at N=16, D=128 -- keep well under ~24 MiB if
                 you raise tb aggressively on v7x (64 MiB physical VMEM), or set
                 vmem_limit_bytes explicitly.
    matmul_bf16: cast the two MXU matmuls' operands to bfloat16 (default True:
                 native fast path on v7x, 256-row tiles on v6e, halves operand
                 traffic on v5e).  LayerNorm / softmax / select math stays f32.
    """
    B, H, W, D = x.shape
    N = H * W
    Dq = params["kvw"].shape[1]
    assert N % 8 == 0 and D % 128 == 0 and Dq % 128 == 0, (
        "kernel assumes sublane-aligned token count and lane-aligned feature dims")

    if tb is None:
        tb = _auto_tb(B)

    # keep x in its source dtype; only reshape + zero-pad the batch to a
    # multiple of tb (the f32 cast happens on the VMEM tile inside the kernel)
    x3 = x.reshape(B, N, D)
    Bp = ((B + tb - 1) // tb) * tb
    if Bp != B:
        x3 = jnp.pad(x3, ((0, Bp - B), (0, 0), (0, 0)))

    mxu_dtype = jnp.bfloat16 if matmul_bf16 else jnp.float32

    # stacked small constants: [scorer w ; LN gamma ; LN beta] -> one input
    consts = jnp.concatenate(
        [params["sw"], params["lng"], params["lnb"]], axis=0).astype(jnp.float32)

    kvw = params["kvw"].astype(mxu_dtype)
    fcw_pad = jnp.pad(params["fcw"],
                      ((0, 0), (0, OUT_PAD - params["fcw"].shape[1]))).astype(mxu_dtype)
    fcb_pad = jnp.pad(params["fcb"],
                      ((0, 0), (0, OUT_PAD - params["fcb"].shape[1])))
    biasT = params["bias_table"].T    # [n, sel] so the gathered row lands on sublanes

    out = pl.pallas_call(
        functools.partial(_relevant_token_attention_kernel, mxu_dtype=mxu_dtype),
        out_shape=jax.ShapeDtypeStruct((Bp, OUT_PAD), jnp.float32),
        grid=(Bp // tb,),
        in_specs=[
            pl.BlockSpec((tb, N, D), lambda b: (b, 0, 0)),      # x (tb batches / step)
            pl.BlockSpec((3, D), lambda b: (0, 0)),             # [scorer; gamma; beta]
            pl.BlockSpec((D, Dq), lambda b: (0, 0)),            # kv W^T
            pl.BlockSpec((1, Dq), lambda b: (0, 0)),            # kv bias
            pl.BlockSpec((N, N), lambda b: (0, 0)),             # bias table (transposed)
            pl.BlockSpec((D, OUT_PAD), lambda b: (0, 0)),       # fc_final W^T (padded)
            pl.BlockSpec((1, OUT_PAD), lambda b: (0, 0)),       # fc_final bias (padded)
        ],
        out_specs=pl.BlockSpec((tb, OUT_PAD), lambda b: (b, 0)),  # per-step, lane-dense
        compiler_params=pltpu.CompilerParams(
            dimension_semantics=("parallel",)),                 # shards across TCs on v7x
    )(x3, consts, kvw, params["kvb"], biasT, fcw_pad, fcb_pad)

    return out[:B, :2]


def reference(x, params):
    """Plain-JAX reference matching the PyTorch eval forward."""
    B, H, W, D = x.shape
    x3 = x.reshape(B, H * W, D).astype(jnp.float32)
    Dq = params["kvw"].shape[1]
    logits = jnp.einsum("bnd,d->bn", x3, params["sw"][0]) + params["sb"][0, 0]
    idx = jnp.argmax(logits, axis=-1)
    selected = x3[jnp.arange(B), idx]

    def ln(t):
        mu = jnp.mean(t, axis=-1, keepdims=True)
        var = jnp.mean((t - mu) ** 2, axis=-1, keepdims=True)
        return (t - mu) / jnp.sqrt(var + 1e-5) * params["lng"][0] + params["lnb"][0]

    xnorm = ln(x3)
    key = xnorm @ params["kvw"] + params["kvb"][0]
    query = ln(selected) @ params["kvw"] + params["kvb"][0]
    attn = jnp.einsum("bd,bnd->bn", query, key) / math.sqrt(Dq)
    attn = attn + params["bias_table"][idx]
    attn = jax.nn.softmax(attn, axis=-1)
    y = jnp.einsum("bn,bnd->bd", attn, xnorm) + selected
    return y @ params["fcw"] + params["fcb"][0]


if __name__ == "__main__":
    B = 16
    window_x, window_y = 4, 4          # N = 16 tokens
    token_dim = 128
    qv_dim = 128

    key = jax.random.PRNGKey(0)
    kx, kp = jax.random.split(key)
    x = jax.random.normal(kx, (B, window_y, window_x, token_dim), jnp.float32)
    params = init_params(kp, window_x, window_y, token_dim, qv_dim)

    ref = jax.block_until_ready(reference(x, params))

    # f32 MXU path (strict check)
    out = jax.block_until_ready(relevant_token_attention(x, params,
                                                         matmul_bf16=False))
    assert out.shape == (B, 2)
    assert np.allclose(np.asarray(out), np.asarray(ref), atol=2e-3, rtol=2e-3), (
        f"f32 mismatch:\n{out}\nvs\n{ref}")

    # bf16 MXU path (default; relaxed tolerance)
    out_bf16 = jax.block_until_ready(relevant_token_attention(x, params,
                                                              matmul_bf16=True))
    assert out_bf16.shape == (B, 2)
    assert np.allclose(np.asarray(out_bf16), np.asarray(ref), atol=3e-2, rtol=3e-2), (
        f"bf16 mismatch:\n{out_bf16}\nvs\n{ref}")

    print("KERNEL_OK")
</pallas_src>

<mosaic_0001>
module attributes {stable_mosaic.version = 11 : i64} {
  func.func @_relevant_token_attention_kernel(%arg0: i32, %arg1: memref<8x16x128xf32, #tpu.memory_space<vmem>>, %arg2: memref<3x128xf32, #tpu.memory_space<vmem>>, %arg3: memref<128x128xf32, #tpu.memory_space<vmem>>, %arg4: memref<1x128xf32, #tpu.memory_space<vmem>>, %arg5: memref<16x16xf32, #tpu.memory_space<vmem>>, %arg6: memref<128x128xf32, #tpu.memory_space<vmem>>, %arg7: memref<1x128xf32, #tpu.memory_space<vmem>>, %arg8: memref<8x128xf32, #tpu.memory_space<vmem>>) attributes {dimension_semantics = [#tpu.dimension_semantics<parallel>], iteration_bounds = array<i64: 2>, scalar_prefetch = 0 : i64, scratch_operands = 0 : i64, tpu.core_type = #tpu.core_type<tc>, window_params = [{transform_indices = @transform_0, window_bounds = array<i64: 8, 16, 128>}, {pipeline_mode = #tpu.pipeline_mode<synchronous>, transform_indices = @transform_1, window_bounds = array<i64: 3, 128>}, {pipeline_mode = #tpu.pipeline_mode<synchronous>, transform_indices = @transform_2, window_bounds = array<i64: 128, 128>}, {pipeline_mode = #tpu.pipeline_mode<synchronous>, transform_indices = @transform_3, window_bounds = array<i64: 1, 128>}, {pipeline_mode = #tpu.pipeline_mode<synchronous>, transform_indices = @transform_4, window_bounds = array<i64: 16, 16>}, {pipeline_mode = #tpu.pipeline_mode<synchronous>, transform_indices = @transform_5, window_bounds = array<i64: 128, 128>}, {pipeline_mode = #tpu.pipeline_mode<synchronous>, transform_indices = @transform_6, window_bounds = array<i64: 1, 128>}, {transform_indices = @transform_7, window_bounds = array<i64: 8, 128>}]} {
    %c0 = arith.constant 0 : index
    %c0_0 = arith.constant 0 : index
    %c0_1 = arith.constant 0 : index
    %0 = vector.load %arg1[%c0, %c0_0, %c0_1] : memref<8x16x128xf32, #tpu.memory_space<vmem>>, vector<8x16x128xf32>
    %1 = vector.shape_cast %0 : vector<8x16x128xf32> to vector<128x128xf32>
    %c0_2 = arith.constant 0 : index
    %c0_3 = arith.constant 0 : index
    %2 = vector.load %arg2[%c0_2, %c0_3] : memref<3x128xf32, #tpu.memory_space<vmem>>, vector<1x128xf32>
    %c1 = arith.constant 1 : index
    %c0_4 = arith.constant 0 : index
    %3 = vector.load %arg2[%c1, %c0_4] : memref<3x128xf32, #tpu.memory_space<vmem>>, vector<1x128xf32>
    %c2 = arith.constant 2 : index
    %c0_5 = arith.constant 0 : index
    %4 = vector.load %arg2[%c2, %c0_5] : memref<3x128xf32, #tpu.memory_space<vmem>>, vector<1x128xf32>
    %5 = vector.broadcast %2 : vector<1x128xf32> to vector<128x128xf32>
    %6 = arith.mulf %1, %5 : vector<128x128xf32>
    %cst = arith.constant dense<0.000000e+00> : vector<128xf32>
    %7 = vector.multi_reduction <add>, %6, %cst [1] : vector<128x128xf32> to vector<128xf32>
    %8 = vector.shape_cast %7 : vector<128xf32> to vector<128x1xf32>
    %9 = vector.shape_cast %8 : vector<128x1xf32> to vector<8x16x1xf32>
    %10 = tpu.iota {dimensions = array<i32: 1>} : vector<8x16x1xi32>
    %cst_6 = arith.constant dense<0xFF800000> : vector<8x1xf32>
    %11 = vector.multi_reduction <maximumf>, %9, %cst_6 [1] : vector<8x16x1xf32> to vector<8x1xf32>
    %12 = vector.shape_cast %11 : vector<8x1xf32> to vector<8x1x1xf32>
    %13 = vector.broadcast %12 : vector<8x1x1xf32> to vector<8x16x1xf32>
    %14 = arith.cmpf oeq, %9, %13 : vector<8x16x1xf32>
    %c16_i32 = arith.constant 16 : i32
    %15 = vector.broadcast %c16_i32 : i32 to vector<8x16x1xi32>
    %16 = arith.select %14, %10, %15 : vector<8x16x1xi1>, vector<8x16x1xi32>
    %cst_7 = arith.constant dense<2147483647> : vector<8x1xi32>
    %17 = vector.multi_reduction <minsi>, %16, %cst_7 [1] : vector<8x16x1xi32> to vector<8x1xi32>
    %18 = vector.shape_cast %17 : vector<8x1xi32> to vector<8x1x1xi32>
    %19 = vector.broadcast %18 : vector<8x1x1xi32> to vector<8x16x1xi32>
    %20 = arith.cmpi eq, %10, %19 : vector<8x16x1xi32>
    %21 = arith.extui %20 : vector<8x16x1xi1> to vector<8x16x1xi32>
    %22 = arith.sitofp %21 : vector<8x16x1xi32> to vector<8x16x1xf32>
    %23 = vector.broadcast %22 : vector<8x16x1xf32> to vector<8x16x128xf32>
    %24 = arith.mulf %0, %23 : vector<8x16x128xf32>
    %cst_8 = arith.constant dense<0.000000e+00> : vector<8x128xf32>
    %25 = vector.multi_reduction <add>, %24, %cst_8 [1] : vector<8x16x128xf32> to vector<8x128xf32>
    %cst_9 = arith.constant dense<0.000000e+00> : vector<128xf32>
    %26 = vector.multi_reduction <add>, %1, %cst_9 [1] : vector<128x128xf32> to vector<128xf32>
    %27 = vector.shape_cast %26 : vector<128xf32> to vector<128x1xf32>
    %cst_10 = arith.constant 1.280000e+02 : f32
    %28 = vector.broadcast %cst_10 : f32 to vector<128x1xf32>
    %29 = arith.divf %27, %28 : vector<128x1xf32>
    %30 = vector.broadcast %29 : vector<128x1xf32> to vector<128x128xf32>
    %31 = arith.subf %1, %30 : vector<128x128xf32>
    %32 = arith.mulf %31, %31 : vector<128x128xf32>
    %cst_11 = arith.constant dense<0.000000e+00> : vector<128xf32>
    %33 = vector.multi_reduction <add>, %32, %cst_11 [1] : vector<128x128xf32> to vector<128xf32>
    %34 = vector.shape_cast %33 : vector<128xf32> to vector<128x1xf32>
    %cst_12 = arith.constant 1.280000e+02 : f32
    %35 = vector.broadcast %cst_12 : f32 to vector<128x1xf32>
    %36 = arith.divf %34, %35 : vector<128x1xf32>
    %37 = vector.broadcast %29 : vector<128x1xf32> to vector<128x128xf32>
    %38 = arith.subf %1, %37 : vector<128x128xf32>
    %cst_13 = arith.constant 9.99999974E-6 : f32
    %39 = vector.broadcast %cst_13 : f32 to vector<128x1xf32>
    %40 = arith.addf %36, %39 : vector<128x1xf32>
    %41 = math.rsqrt %40 : vector<128x1xf32>
    %42 = vector.broadcast %41 : vector<128x1xf32> to vector<128x128xf32>
    %43 = arith.mulf %38, %42 : vector<128x128xf32>
    %44 = vector.broadcast %3 : vector<1x128xf32> to vector<128x128xf32>
    %45 = arith.mulf %43, %44 : vector<128x128xf32>
    %46 = vector.broadcast %4 : vector<1x128xf32> to vector<128x128xf32>
    %47 = arith.addf %45, %46 : vector<128x128xf32>
    %c0_14 = arith.constant 0 : index
    %c0_15 = arith.constant 0 : index
    %48 = vector.load %arg3[%c0_14, %c0_15] : memref<128x128xf32, #tpu.memory_space<vmem>>, vector<128x128xf32>
    %cst_16 = arith.constant dense<0.000000e+00> : vector<128x128xf32>
    %49 = tpu.matmul %47, %48, %cst_16 {dimension_numbers = #tpu.dot_dimension_numbers<[1], [0], [0], [1], [0, 0, 1, 1], [], []>} : vector<128x128xf32>, vector<128x128xf32>, vector<128x128xf32> -> vector<128x128xf32>
    %c0_17 = arith.constant 0 : index
    %c0_18 = arith.constant 0 : index
    %50 = vector.load %arg4[%c0_17, %c0_18] : memref<1x128xf32, #tpu.memory_space<vmem>>, vector<1x128xf32>
    %51 = vector.broadcast %50 : vector<1x128xf32> to vector<128x128xf32>
    %52 = arith.addf %49, %51 : vector<128x128xf32>
    %53 = vector.shape_cast %52 : vector<128x128xf32> to vector<8x16x128xf32>
    %54 = vector.broadcast %22 : vector<8x16x1xf32> to vector<8x16x128xf32>
    %55 = arith.mulf %53, %54 : vector<8x16x128xf32>
    %cst_19 = arith.constant dense<0.000000e+00> : vector<8x128xf32>
    %56 = vector.multi_reduction <add>, %55, %cst_19 [1] : vector<8x16x128xf32> to vector<8x128xf32>
    %cst_20 = arith.constant 0.0883883461 : f32
    %57 = vector.broadcast %cst_20 : f32 to vector<8x128xf32>
    %58 = arith.mulf %56, %57 : vector<8x128xf32>
    %59 = vector.shape_cast %58 : vector<8x128xf32> to vector<8x1x128xf32>
    %60 = vector.broadcast %59 : vector<8x1x128xf32> to vector<8x16x128xf32>
    %61 = arith.mulf %53, %60 : vector<8x16x128xf32>
    %cst_21 = arith.constant dense<0.000000e+00> : vector<8x16xf32>
    %62 = vector.multi_reduction <add>, %61, %cst_21 [2] : vector<8x16x128xf32> to vector<8x16xf32>
    %63 = vector.shape_cast %62 : vector<8x16xf32> to vector<8x16x1xf32>
    %64 = tpu.iota {dimensions = array<i32: 2>} : vector<8x1x16xi32>
    %65 = vector.broadcast %18 : vector<8x1x1xi32> to vector<8x1x16xi32>
    %66 = arith.cmpi eq, %64, %65 : vector<8x1x16xi32>
    %67 = arith.extui %66 : vector<8x1x16xi1> to vector<8x1x16xi32>
    %68 = arith.sitofp %67 : vector<8x1x16xi32> to vector<8x1x16xf32>
    %c0_22 = arith.constant 0 : index
    %c0_23 = arith.constant 0 : index
    %69 = vector.load %arg5[%c0_22, %c0_23] : memref<16x16xf32, #tpu.memory_space<vmem>>, vector<16x16xf32>
    %70 = vector.shape_cast %69 : vector<16x16xf32> to vector<1x16x16xf32>
    %71 = vector.broadcast %70 : vector<1x16x16xf32> to vector<8x16x16xf32>
    %72 = vector.broadcast %68 : vector<8x1x16xf32> to vector<8x16x16xf32>
    %73 = arith.mulf %71, %72 : vector<8x16x16xf32>
    %cst_24 = arith.constant dense<0.000000e+00> : vector<8x16xf32>
    %74 = vector.multi_reduction <add>, %73, %cst_24 [2] : vector<8x16x16xf32> to vector<8x16xf32>
    %75 = vector.shape_cast %74 : vector<8x16xf32> to vector<8x16x1xf32>
    %76 = arith.addf %63, %75 : vector<8x16x1xf32>
    %cst_25 = arith.constant dense<0xFF800000> : vector<8x1xf32>
    %77 = vector.multi_reduction <maximumf>, %76, %cst_25 [1] : vector<8x16x1xf32> to vector<8x1xf32>
    %78 = vector.shape_cast %77 : vector<8x1xf32> to vector<8x1x1xf32>
    %79 = vector.broadcast %78 : vector<8x1x1xf32> to vector<8x16x1xf32>
    %80 = arith.subf %76, %79 : vector<8x16x1xf32>
    %81 = math.exp %80 : vector<8x16x1xf32>
    %cst_26 = arith.constant dense<0.000000e+00> : vector<8x1xf32>
    %82 = vector.multi_reduction <add>, %81, %cst_26 [1] : vector<8x16x1xf32> to vector<8x1xf32>
    %83 = vector.shape_cast %82 : vector<8x1xf32> to vector<8x1x1xf32>
    %84 = tpu.reciprocal %83 {approx = true} : vector<8x1x1xf32> -> vector<8x1x1xf32>
    %85 = vector.broadcast %84 : vector<8x1x1xf32> to vector<8x16x1xf32>
    %86 = arith.mulf %81, %85 : vector<8x16x1xf32>
    %87 = vector.shape_cast %47 : vector<128x128xf32> to vector<8x16x128xf32>
    %88 = vector.broadcast %86 : vector<8x16x1xf32> to vector<8x16x128xf32>
    %89 = arith.mulf %88, %87 : vector<8x16x128xf32>
    %cst_27 = arith.constant dense<0.000000e+00> : vector<8x128xf32>
    %90 = vector.multi_reduction <add>, %89, %cst_27 [1] : vector<8x16x128xf32> to vector<8x128xf32>
    %91 = arith.addf %90, %25 : vector<8x128xf32>
    %c0_28 = arith.constant 0 : index
    %c0_29 = arith.constant 0 : index
    %92 = vector.load %arg6[%c0_28, %c0_29] : memref<128x128xf32, #tpu.memory_space<vmem>>, vector<128x128xf32>
    %cst_30 = arith.constant dense<0.000000e+00> : vector<8x128xf32>
    %93 = tpu.matmul %91, %92, %cst_30 {dimension_numbers = #tpu.dot_dimension_numbers<[1], [0], [0], [1], [0, 0, 1, 1], [], []>} : vector<8x128xf32>, vector<128x128xf32>, vector<8x128xf32> -> vector<8x128xf32>
    %c0_31 = arith.constant 0 : index
    %c0_32 = arith.constant 0 : index
    %94 = vector.load %arg7[%c0_31, %c0_32] : memref<1x128xf32, #tpu.memory_space<vmem>>, vector<1x128xf32>
    %95 = vector.broadcast %94 : vector<1x128xf32> to vector<8x128xf32>
    %96 = arith.addf %93, %95 : vector<8x128xf32>
    %c0_33 = arith.constant 0 : index
    %c0_34 = arith.constant 0 : index
    %97 = vector.load %arg8[%c0_33, %c0_34] : memref<8x128xf32, #tpu.memory_space<vmem>>, vector<8x128xf32>
    tpu.vector_store %arg8[%c0_33, %c0_34], %96 {strides = array<i32>} : memref<8x128xf32, #tpu.memory_space<vmem>>, vector<8x128xf32>,
    return
  }
  func.func @transform_0(%arg0: i32) -> (i32, i32, i32) {
    %c0_i32 = arith.constant 0 : i32
    %c0_i32_0 = arith.constant 0 : i32
    %c0_i32_1 = arith.constant 0 : i32
    return %arg0, %c0_i32, %c0_i32_0 : i32, i32, i32
  }
  func.func @transform_1(%arg0: i32) -> (i32, i32) {
    %c0_i32 = arith.constant 0 : i32
    %c0_i32_0 = arith.constant 0 : i32
    %c0_i32_1 = arith.constant 0 : i32
    return %c0_i32, %c0_i32_0 : i32, i32
  }
  func.func @transform_2(%arg0: i32) -> (i32, i32) {
    %c0_i32 = arith.constant 0 : i32
    %c0_i32_0 = arith.constant 0 : i32
    %c0_i32_1 = arith.constant 0 : i32
    return %c0_i32, %c0_i32_0 : i32, i32
  }
  func.func @transform_3(%arg0: i32) -> (i32, i32) {
    %c0_i32 = arith.constant 0 : i32
    %c0_i32_0 = arith.constant 0 : i32
    %c0_i32_1 = arith.constant 0 : i32
    return %c0_i32, %c0_i32_0 : i32, i32
  }
  func.func @transform_4(%arg0: i32) -> (i32, i32) {
    %c0_i32 = arith.constant 0 : i32
    %c0_i32_0 = arith.constant 0 : i32
    %c0_i32_1 = arith.constant 0 : i32
    return %c0_i32, %c0_i32_0 : i32, i32
  }
  func.func @transform_5(%arg0: i32) -> (i32, i32) {
    %c0_i32 = arith.constant 0 : i32
    %c0_i32_0 = arith.constant 0 : i32
    %c0_i32_1 = arith.constant 0 : i32
    return %c0_i32, %c0_i32_0 : i32, i32
  }
  func.func @transform_6(%arg0: i32) -> (i32, i32) {
    %c0_i32 = arith.constant 0 : i32
    %c0_i32_0 = arith.constant 0 : i32
    %c0_i32_1 = arith.constant 0 : i32
    return %c0_i32, %c0_i32_0 : i32, i32
  }
  func.func @transform_7(%arg0: i32) -> (i32, i32) {
    %c0_i32 = arith.constant 0 : i32
    %c0_i32_0 = arith.constant 0 : i32
    return %arg0, %c0_i32 : i32, i32
  }
}

</mosaic_0001>

<llo_original>
// kernel: tpu_custom_call.1
$region0: #{tpu_custom_call.1}
  #allocation0 [shape = 'u32[]', space=smem, size = 0x4, offset = 0x4, fixed_abs, tag = 'smem constant byte address 0x4 - core index']
  #allocation1 [shape = 'u32[144,128]{1,0:T(1,128)}', space=vmem, size = 0x12000, scoped, tag = 'internal scratch']
  %s0 = inlined_call_operand.hbm [shape: f32[16,16,128], index: 0, kind: input, shape index: {}]
  %s1 = inlined_call_operand.hbm [shape: f32[3,128], index: 1, kind: input, shape index: {}]
  %s2 = inlined_call_operand.hbm [shape: f32[128,128], index: 2, kind: input, shape index: {}]
  %s3 = inlined_call_operand.vmem [shape: f32[1,128], index: 3, kind: input, shape index: {}]
  %s4 = inlined_call_operand.hbm [shape: f32[16,16], index: 4, kind: input, shape index: {}]
  %s5 = inlined_call_operand.hbm [shape: f32[128,128], index: 5, kind: input, shape index: {}]
  %s6 = inlined_call_operand.vmem [shape: f32[1,128], index: 6, kind: input, shape index: {}]
  %s7 = inlined_call_operand.hbm [shape: f32[16,128], index: 7, kind: output, shape index: {}]
  %s8 = sld [smem:[#allocation0]]
  $region81: #{tpu_custom_call.1} parent=0
    _
  %s10 = ssub.s32 1, %s8
  %s11 = scalar_select 0, %s10, %s8
  $region1: #{tpu_custom_call.1} parent=0
    #allocation2 [shape = 'u8[131072]{0}', space=vmem, size = 0x20000, scoped, tag = 'input window, operand 0']
    #allocation3 [shape = 's32[2]{0}', space=sflag, size = 0x8, scoped, tag = 'scoped memory for tpu_custom_call.1']
    #allocation4 [shape = 's32[2]{0}', space=sflag, size = 0x8, scoped, tag = 'scoped memory for tpu_custom_call.1']
    #allocation5 [shape = 'u8[2048]{0}', space=vmem, size = 0x800, scoped, tag = 'input window, operand 1, single buffered']
    #allocation6 [shape = 's32[1]{0}', space=sflag, size = 0x4, scoped, tag = 'scoped memory for tpu_custom_call.1']
    #allocation7 [shape = 'u8[65536]{0}', space=vmem, size = 0x10000, scoped, tag = 'input window, operand 2, single buffered']
    #allocation8 [shape = 'u8[8192]{0}', space=vmem, size = 0x2000, scoped, tag = 'input window, operand 4, single buffered']
    #allocation9 [shape = 's32[1]{0}', space=sflag, size = 0x4, scoped, tag = 'scoped memory for tpu_custom_call.1']
    #allocation10 [shape = 'u8[65536]{0}', space=vmem, size = 0x10000, scoped, tag = 'input window, operand 5, single buffered']
    #allocation11 [shape = 'u8[8192]{0}', space=vmem, size = 0x2000, scoped, tag = 'output window, operand 0']
    %12 = vsyncpa [#allocation3], 0
    %s13 = scalar_lea.sflag [#allocation3], 1
    %14 = vsyncpa %s13, 0
    %15 = vsyncpa [#allocation6], 0
    %16 = vsyncpa [#allocation9], 0
    %17 = vsyncpa [#allocation4], 0
    %s18 = scalar_lea.sflag [#allocation4], 1
    %19 = vsyncpa %s18, 0
    loop: start=0, step=1, limit=4
    $region2: #{tpu_custom_call.1} parent=1 // loop_pre_header
      _
    $region3: #{tpu_custom_call.1} parent=1 // loop_header
      %s21 = sphi 0, %s25
      %p22 = scmp.ge.s32.totalorder %s21, 4
      %s31 = sphi 0, %s33
      %s34 = sphi 0, %s31
      %s35 = sphi 0, %s34
      %s51 = sphi 0, %s35
      %s55 = sphi 0, %s55
      %s57 = sphi 0, %s55
      %s58 = sphi 0, %s57
      %s72 = sphi 0, %s58
      %s76 = sphi 0, %s76
      %s78 = sphi 0, %s76
      %s79 = sphi 0, %s78
      %s93 = sphi 0, %s79
      %s97 = sphi 0, %s97
      %s99 = sphi 0, %s97
      %s100 = sphi 0, %s99
      %s114 = sphi 0, %s100
      %s118 = sphi 0, %s118
      %s120 = sphi 0, %s118
      %s121 = sphi 0, %s120
      %s135 = sphi 0, %s121
      %s139 = sphi 0, %s139
      %s141 = sphi 0, %s139
      %s142 = sphi 0, %s141
      %s156 = sphi 0, %s142
      %s160 = sphi 0, %s160
      %s162 = sphi 0, %s160
      %s163 = sphi 0, %s162
      %s177 = sphi 0, %s163
      %s183 = sphi 0, %s185
      %s186 = sphi 0, %s183
      %s187 = sphi 0, %s186
      %s203 = sphi 0, %s187
    $region4: #{tpu_custom_call.1} parent=1 // loop_header_branch
      %24 = sbr.rel (%p22) target = $region8
    $region5: #{tpu_custom_call.1} parent=1 // loop_body
      %s26 = ssub.s32 %s21, 1
      %s27 = ssub.s32 %s21, 2
      %s28 = sadd.s32 %s21, 1
      %s29 = ssub.s32 %s21, %s28
      %p30 = scmp.eq.s32.totalorder %s29, 0
      %s32 = sadd.s32 %s31, 1
      %s33 = scalar_select %p30, %s31, %s32
      %p36 = pneg %p30
      %p37 = scmp.eq.s32.totalorder %s21, 1
      %p38 = por %p36, %p37
      %p39 = scmp.ne.s32.totalorder %s31, %s34
      %p40 = scmp.eq.s32.totalorder %s21, 0
      %p41 = por %p39, %p40
      %p42 = scmp.ne.s32.totalorder %s31, %s34
      %p43 = scmp.eq.s32.totalorder %s26, 1
      %p44 = por %p42, %p43
      %p45 = scmp.ne.s32.totalorder %s34, %s35
      %p46 = scmp.eq.s32.totalorder %s26, 0
      %p47 = por %p45, %p46
      %p48 = scmp.ne.s32.totalorder %s34, %s35
      %p49 = scmp.eq.s32.totalorder %s27, 1
      %p50 = por %p48, %p49
      %p52 = scmp.ne.s32.totalorder %s35, %s51
      %p53 = scmp.eq.s32.totalorder %s27, 0
      %p54 = por %p52, %p53
      %s56 = sadd.s32 %s55, 1
      %p59 = scmp.eq.s32.totalorder %s21, 1
      %p60 = scmp.ne.s32.totalorder %s55, %s57
      %p61 = scmp.eq.s32.totalorder %s21, 0
      %p62 = por %p60, %p61
      %p63 = scmp.ne.s32.totalorder %s55, %s57
      %p64 = scmp.eq.s32.totalorder %s26, 1
      %p65 = por %p63, %p64
      %p66 = scmp.ne.s32.totalorder %s57, %s58
      %p67 = scmp.eq.s32.totalorder %s26, 0
      %p68 = por %p66, %p67
      %p69 = scmp.ne.s32.totalorder %s57, %s58
      %p70 = scmp.eq.s32.totalorder %s27, 1
      %p71 = por %p69, %p70
      %p73 = scmp.ne.s32.totalorder %s58, %s72
      %p74 = scmp.eq.s32.totalorder %s27, 0
      %p75 = por %p73, %p74
      %s77 = sadd.s32 %s76, 1
      %p80 = scmp.eq.s32.totalorder %s21, 1
      %p81 = scmp.ne.s32.totalorder %s76, %s78
      %p82 = scmp.eq.s32.totalorder %s21, 0
      %p83 = por %p81, %p82
      %p84 = scmp.ne.s32.totalorder %s76, %s78
      %p85 = scmp.eq.s32.totalorder %s26, 1
      %p86 = por %p84, %p85
      %p87 = scmp.ne.s32.totalorder %s78, %s79
      %p88 = scmp.eq.s32.totalorder %s26, 0
      %p89 = por %p87, %p88
      %p90 = scmp.ne.s32.totalorder %s78, %s79
      %p91 = scmp.eq.s32.totalorder %s27, 1
      %p92 = por %p90, %p91
      %p94 = scmp.ne.s32.totalorder %s79, %s93
      %p95 = scmp.eq.s32.totalorder %s27, 0
      %p96 = por %p94, %p95
      %s98 = sadd.s32 %s97, 1
      %p101 = scmp.eq.s32.totalorder %s21, 1
      %p102 = scmp.ne.s32.totalorder %s97, %s99
      %p103 = scmp.eq.s32.totalorder %s21, 0
      %p104 = por %p102, %p103
      %p105 = scmp.ne.s32.totalorder %s97, %s99
      %p106 = scmp.eq.s32.totalorder %s26, 1
      %p107 = por %p105, %p106
      %p108 = scmp.ne.s32.totalorder %s99, %s100
      %p109 = scmp.eq.s32.totalorder %s26, 0
      %p110 = por %p108, %p109
      %p111 = scmp.ne.s32.totalorder %s99, %s100
      %p112 = scmp.eq.s32.totalorder %s27, 1
      %p113 = por %p111, %p112
      %p115 = scmp.ne.s32.totalorder %s100, %s114
      %p116 = scmp.eq.s32.totalorder %s27, 0
      %p117 = por %p115, %p116
      %s119 = sadd.s32 %s118, 1
      %p122 = scmp.eq.s32.totalorder %s21, 1
      %p123 = scmp.ne.s32.totalorder %s118, %s120
      %p124 = scmp.eq.s32.totalorder %s21, 0
      %p125 = por %p123, %p124
      %p126 = scmp.ne.s32.totalorder %s118, %s120
      %p127 = scmp.eq.s32.totalorder %s26, 1
      %p128 = por %p126, %p127
      %p129 = scmp.ne.s32.totalorder %s120, %s121
      %p130 = scmp.eq.s32.totalorder %s26, 0
      %p131 = por %p129, %p130
      %p132 = scmp.ne.s32.totalorder %s120, %s121
      %p133 = scmp.eq.s32.totalorder %s27, 1
      %p134 = por %p132, %p133
      %p136 = scmp.ne.s32.totalorder %s121, %s135
      %p137 = scmp.eq.s32.totalorder %s27, 0
      %p138 = por %p136, %p137
      %s140 = sadd.s32 %s139, 1
      %p143 = scmp.eq.s32.totalorder %s21, 1
      %p144 = scmp.ne.s32.totalorder %s139, %s141
      %p145 = scmp.eq.s32.totalorder %s21, 0
      %p146 = por %p144, %p145
      %p147 = scmp.ne.s32.totalorder %s139, %s141
      %p148 = scmp.eq.s32.totalorder %s26, 1
      %p149 = por %p147, %p148
      %p150 = scmp.ne.s32.totalorder %s141, %s142
      %p151 = scmp.eq.s32.totalorder %s26, 0
      %p152 = por %p150, %p151
      %p153 = scmp.ne.s32.totalorder %s141, %s142
      %p154 = scmp.eq.s32.totalorder %s27, 1
      %p155 = por %p153, %p154
      %p157 = scmp.ne.s32.totalorder %s142, %s156
      %p158 = scmp.eq.s32.totalorder %s27, 0
      %p159 = por %p157, %p158
      %s161 = sadd.s32 %s160, 1
      %p164 = scmp.eq.s32.totalorder %s21, 1
      %p165 = scmp.ne.s32.totalorder %s160, %s162
      %p166 = scmp.eq.s32.totalorder %s21, 0
      %p167 = por %p165, %p166
      %p168 = scmp.ne.s32.totalorder %s160, %s162
      %p169 = scmp.eq.s32.totalorder %s26, 1
      %p170 = por %p168, %p169
      %p171 = scmp.ne.s32.totalorder %s162, %s163
      %p172 = scmp.eq.s32.totalorder %s26, 0
      %p173 = por %p171, %p172
      %p174 = scmp.ne.s32.totalorder %s162, %s163
      %p175 = scmp.eq.s32.totalorder %s27, 1
      %p176 = por %p174, %p175
      %p178 = scmp.ne.s32.totalorder %s163, %s177
      %p179 = scmp.eq.s32.totalorder %s27, 0
      %p180 = por %p178, %p179
      %s181 = ssub.s32 %s21, %s28
      %p182 = scmp.eq.s32.totalorder %s181, 0
      %s184 = sadd.s32 %s183, 1
      %s185 = scalar_select %p182, %s183, %s184
      %p188 = pneg %p182
      %p189 = scmp.eq.s32.totalorder %s21, 1
      %p190 = por %p188, %p189
      %p191 = scmp.ne.s32.totalorder %s183, %s186
      %p192 = scmp.eq.s32.totalorder %s21, 0
      %p193 = por %p191, %p192
      %p194 = scmp.ne.s32.totalorder %s183, %s186
      %p195 = scmp.eq.s32.totalorder %s26, 1
      %p196 = por %p194, %p195
      %p197 = scmp.ne.s32.totalorder %s186, %s187
      %p198 = scmp.eq.s32.totalorder %s26, 0
      %p199 = por %p197, %p198
      %p200 = scmp.ne.s32.totalorder %s186, %s187
      %p201 = scmp.eq.s32.totalorder %s27, 1
      %p202 = por %p200, %p201
      %p204 = scmp.ne.s32.totalorder %s187, %s203
      %p205 = scmp.eq.s32.totalorder %s27, 0
      %p206 = por %p204, %p205
      %p207 = scmp.le.s32.totalorder 1, %s21
      %p208 = scmp.lt.s32.totalorder %s21, 3
      %p209 = pnand %p207, %p208
      %p210 = pneg %p209
      // Predicated region
      $region9: #{tpu_custom_call.1} parent=5 // pred_check
        _
      $region10: #{tpu_custom_call.1} parent=5 // pred_check_branch
        %212 = sbr.rel (%p209) target = $region12
      $region11: #{tpu_custom_call.1} parent=5 // pred_region
        %s213 = ssub.s32 %s21, 1
        // Predicated region
        $region13: #{tpu_custom_call.1} parent=11 // pred_check
          %p214 = pneg %p68
        $region14: #{tpu_custom_call.1} parent=11 // pred_check_branch
          %216 = sbr.rel (%p214) target = $region16
        $region15: #{tpu_custom_call.1} parent=11 // pred_region
          %s218 = ssub.s32 64, 64
          %219 = vsyncadd [#allocation6], %s218
          %s221 = sshll.u32 [#allocation5], 4
          %s222 = int_to_ptr.vmem [resolvable:$true] %s221
          %224 = dma.hbm_to_vmem [thread:$0]  %s1, 64, %s222, [#allocation6]
        $region16: #{tpu_custom_call.1} parent=11 // pred_fallthru
          _
        // Predicated region
        $region17: #{tpu_custom_call.1} parent=11 // pred_check
          %p225 = pneg %p89
        $region18: #{tpu_custom_call.1} parent=11 // pred_check_branch
          %227 = sbr.rel (%p225) target = $region20
        $region19: #{tpu_custom_call.1} parent=11 // pred_region
          %s229 = ssub.s32 2048, 2048
          %230 = vsyncadd [#allocation6], %s229
          %s231 = sshll.u32 [#allocation7], 4
          %s232 = int_to_ptr.vmem [resolvable:$true] %s231
          %237 = dma.hbm_to_vmem [thread:$0]  %s2, 2048, %s232, [#allocation6], 128, 128, 8
        $region20: #{tpu_custom_call.1} parent=11 // pred_fallthru
          _
        // Predicated region
        $region21: #{tpu_custom_call.1} parent=11 // pred_check
          %p238 = pneg %p110
        $region22: #{tpu_custom_call.1} parent=11 // pred_check_branch
          %240 = sbr.rel (%p238) target = $region24
        $region23: #{tpu_custom_call.1} parent=11 // pred_region
          _
        $region24: #{tpu_custom_call.1} parent=11 // pred_fallthru
          _
        // Predicated region
        $region25: #{tpu_custom_call.1} parent=11 // pred_check
          %p241 = pneg %p131
        $region26: #{tpu_custom_call.1} parent=11 // pred_check_branch
          %243 = sbr.rel (%p241) target = $region28
        $region27: #{tpu_custom_call.1} parent=11 // pred_region
          %s245 = ssub.s32 256, 256
          %246 = vsyncadd [#allocation9], %s245
          %s247 = sshll.u32 [#allocation8], 4
          %s248 = int_to_ptr.vmem [resolvable:$true] %s247
          %253 = dma.hbm_to_vmem [thread:$0]  %s4, 256, %s248, [#allocation9], 128, 128, 8
        $region28: #{tpu_custom_call.1} parent=11 // pred_fallthru
          _
        // Predicated region
        $region29: #{tpu_custom_call.1} parent=11 // pred_check
          %p254 = pneg %p152
        $region30: #{tpu_custom_call.1} parent=11 // pred_check_branch
          %256 = sbr.rel (%p254) target = $region32
        $region31: #{tpu_custom_call.1} parent=11 // pred_region
          %s258 = ssub.s32 2048, 2048
          %259 = vsyncadd [#allocation9], %s258
          %s260 = sshll.u32 [#allocation10], 4
          %s261 = int_to_ptr.vmem [resolvable:$true] %s260
          %266 = dma.hbm_to_vmem [thread:$0]  %s5, 2048, %s261, [#allocation9], 128, 128, 8
        $region32: #{tpu_custom_call.1} parent=11 // pred_fallthru
          _
        // Predicated region
        $region33: #{tpu_custom_call.1} parent=11 // pred_check
          %p267 = pneg %p173
        $region34: #{tpu_custom_call.1} parent=11 // pred_check_branch
          %269 = sbr.rel (%p267) target = $region36
        $region35: #{tpu_custom_call.1} parent=11 // pred_region
          _
        $region36: #{tpu_custom_call.1} parent=11 // pred_fallthru
          _
      $region12: #{tpu_custom_call.1} parent=5 // pred_fallthru
        _
      %p270 = scmp.lt.s32.totalorder %s21, 2
      // Predicated region
      $region37: #{tpu_custom_call.1} parent=5 // pred_check
        %p271 = pneg %p270
      $region38: #{tpu_custom_call.1} parent=5 // pred_check_branch
        %273 = sbr.rel (%p271) target = $region40
      $region39: #{tpu_custom_call.1} parent=5 // pred_region
        // Predicated region
        $region41: #{tpu_custom_call.1} parent=39 // pred_check
          %p274 = pneg %p41
        $region42: #{tpu_custom_call.1} parent=39 // pred_check_branch
          %276 = sbr.rel (%p274) target = $region44
        $region43: #{tpu_custom_call.1} parent=39 // pred_region
          %s277 = sand.u32 %s31, 1
          %s278 = scalar_lea.sflag [#allocation3], %s277
          %s279 = sand.u32 %s31, 1
          %s280 = smul.addr %s279, 128
          %s281 = scalar_lea.vmem [#allocation2], %s280
          %s282 = smul.u32 8, %s21
          %s284 = ssub.s32 2048, 2048
          %285 = vsyncadd %s278, %s284
          %s286 = smul.addr %s282, 2
          %s287 = smul.addr %s286, 128
          %s288 = scalar_lea.hbm %s0, %s287
          %s289 = sshll.u32 %s281, 4
          %s290 = int_to_ptr.vmem [resolvable:$true] %s289
          %295 = dma.hbm_to_vmem [thread:$0]  %s288, 2048, %s290, %s278, 128, 128, 8
        $region44: #{tpu_custom_call.1} parent=39 // pred_fallthru
          _
      $region40: #{tpu_custom_call.1} parent=5 // pred_fallthru
        _
      %p296 = scmp.le.s32.totalorder 1, %s21
      %p297 = scmp.lt.s32.totalorder %s21, 3
      %p298 = pnand %p296, %p297
      %p299 = pneg %p298
      // Predicated region
      $region45: #{tpu_custom_call.1} parent=5 // pred_check
        _
      $region46: #{tpu_custom_call.1} parent=5 // pred_check_branch
        %301 = sbr.rel (%p298) target = $region48
      $region47: #{tpu_custom_call.1} parent=5 // pred_region
        %s302 = ssub.s32 %s21, 1
        %s303 = sand.u32 %s34, 1
        %s304 = scalar_lea.sflag [#allocation3], %s303
        %s305 = sand.u32 %s34, 1
        %s306 = smul.addr %s305, 128
        %s307 = scalar_lea.vmem [#allocation2], %s306
        // Predicated region
        $region49: #{tpu_custom_call.1} parent=47 // pred_check
          %p308 = pneg %p47
        $region50: #{tpu_custom_call.1} parent=47 // pred_check_branch
          %310 = sbr.rel (%p308) target = $region52
        $region51: #{tpu_custom_call.1} parent=47 // pred_region
          %311 = dma.done %s304, 2048
        $region52: #{tpu_custom_call.1} parent=47 // pred_fallthru
          _
        // Predicated region
        $region53: #{tpu_custom_call.1} parent=47 // pred_check
          %p312 = pneg %p68
        $region54: #{tpu_custom_call.1} parent=47 // pred_check_branch
          %314 = sbr.rel (%p312) target = $region56
        $region55: #{tpu_custom_call.1} parent=47 // pred_region
          %315 = dma.done [#allocation6], 64
        $region56: #{tpu_custom_call.1} parent=47 // pred_fallthru
          _
        // Predicated region
        $region57: #{tpu_custom_call.1} parent=47 // pred_check
          %p316 = pneg %p89
        $region58: #{tpu_custom_call.1} parent=47 // pred_check_branch
          %318 = sbr.rel (%p316) target = $region60
        $region59: #{tpu_custom_call.1} parent=47 // pred_region
          %319 = dma.done [#allocation6], 2048
        $region60: #{tpu_custom_call.1} parent=47 // pred_fallthru
          _
        // Predicated region
        $region61: #{tpu_custom_call.1} parent=47 // pred_check
          %p320 = pneg %p131
        $region62: #{tpu_custom_call.1} parent=47 // pred_check_branch
          %322 = sbr.rel (%p320) target = $region64
        $region63: #{tpu_custom_call.1} parent=47 // pred_region
          %323 = dma.done [#allocation9], 256
        $region64: #{tpu_custom_call.1} parent=47 // pred_fallthru
          _
        // Predicated region
        $region65: #{tpu_custom_call.1} parent=47 // pred_check
          %p324 = pneg %p152
        $region66: #{tpu_custom_call.1} parent=47 // pred_check_branch
          %326 = sbr.rel (%p324) target = $region68
        $region67: #{tpu_custom_call.1} parent=47 // pred_region
          %327 = dma.done [#allocation9], 2048
        $region68: #{tpu_custom_call.1} parent=47 // pred_fallthru
          _
        %s328 = sand.u32 %s34, 1
        %s329 = scalar_lea.sflag [#allocation3], %s328
        %s330 = sand.u32 %s34, 1
        %s331 = smul.addr %s330, 128
        %s332 = scalar_lea.vmem [#allocation2], %s331
        %p333 = pneg %p47
        %p334 = pneg %p44
        %p335 = pneg %p68
        %p336 = pneg %p65
        %p337 = pneg %p89
        %p338 = pneg %p86
        %p339 = pneg %p110
        %p340 = pneg %p107
        %p341 = pneg %p131
        %p342 = pneg %p128
        %p343 = pneg %p152
        %p344 = pneg %p149
        %p345 = pneg %p173
        %p346 = pneg %p170
        %p347 = pneg %p199
        %p348 = pneg %p196
        %s349 = sand.u32 %s186, 1
        %s350 = scalar_lea.sflag [#allocation4], %s349
        %s351 = sand.u32 %s186, 1
        %s352 = smul.addr %s351, 8
        %s353 = scalar_lea.vmem [#allocation11], %s352
        %s354 = smul.u32 8, %s26
        %v355 = vld [vmem:[%s307] sm:$0xff]
        %v356 = vld [vmem:[%s307 + $0x8] sm:$0xff]
        %v357 = vld [vmem:[%s307 + $0x10] sm:$0xff]
        %v358 = vld [vmem:[%s307 + $0x18] sm:$0xff]
        %v359 = vld [vmem:[%s307 + $0x20] sm:$0xff]
        %v360 = vld [vmem:[%s307 + $0x28] sm:$0xff]
        %v361 = vld [vmem:[%s307 + $0x30] sm:$0xff]
        %v362 = vld [vmem:[%s307 + $0x38] sm:$0xff]
        %v363 = vld [vmem:[%s307 + $0x40] sm:$0xff]
        %v364 = vld [vmem:[%s307 + $0x48] sm:$0xff]
        %v365 = vld [vmem:[%s307 + $0x50] sm:$0xff]
        %v366 = vld [vmem:[%s307 + $0x58] sm:$0xff]
        %v367 = vld [vmem:[%s307 + $0x60] sm:$0xff]
        %v368 = vld [vmem:[%s307 + $0x68] sm:$0xff]
        %v369 = vld [vmem:[%s307 + $0x70] sm:$0xff]
        %v370 = vld [vmem:[%s307 + $0x78] sm:$0xff]
        %v371 = vld [vmem:[#allocation5] sm:$0x1]
        %v372 = vld [vmem:[#allocation5 + $0x1] sm:$0x1]
        %v373 = vld [vmem:[#allocation5 + $0x2] sm:$0x1]
        %v374 = vlaneseq
        %v375 = vshrl.u32 %v374, 7
        %v376 = vsub.s32 0, %v375
        %v377 = vrot.slane %v371, %v376
        %v378 = vmul.f32 %v355, %v377
        %v379 = vmul.f32 %v356, %v377
        %v380 = vmul.f32 %v357, %v377
        %v381 = vmul.f32 %v358, %v377
        %v382 = vmul.f32 %v359, %v377
        %v383 = vmul.f32 %v360, %v377
        %v384 = vmul.f32 %v361, %v377
        %v385 = vmul.f32 %v362, %v377
        %v386 = vmul.f32 %v363, %v377
        %v387 = vmul.f32 %v364, %v377
        %v388 = vmul.f32 %v365, %v377
        %v389 = vmul.f32 %v366, %v377
        %v390 = vmul.f32 %v367, %v377
        %v391 = vmul.f32 %v368, %v377
        %v392 = vmul.f32 %v369, %v377
        %v393 = vmul.f32 %v370, %v377
        %394 = vadd.xlane.f32.xlu0 %v378
        %v395 = vpop.xlane.xlu0 %394
        %396 = vadd.xlane.f32.xlu0 %v379
        %v397 = vpop.xlane.xlu0 %396
        %398 = vadd.xlane.f32.xlu0 %v380
        %v399 = vpop.xlane.xlu0 %398
        %400 = vadd.xlane.f32.xlu0 %v381
        %v401 = vpop.xlane.xlu0 %400
        %402 = vadd.xlane.f32.xlu0 %v382
        %v403 = vpop.xlane.xlu0 %402
        %404 = vadd.xlane.f32.xlu0 %v383
        %v405 = vpop.xlane.xlu0 %404
        %406 = vadd.xlane.f32.xlu0 %v384
        %v407 = vpop.xlane.xlu0 %406
        %408 = vadd.xlane.f32.xlu0 %v385
        %v409 = vpop.xlane.xlu0 %408
        %410 = vadd.xlane.f32.xlu0 %v386
        %v411 = vpop.xlane.xlu0 %410
        %412 = vadd.xlane.f32.xlu0 %v387
        %v413 = vpop.xlane.xlu0 %412
        %414 = vadd.xlane.f32.xlu0 %v388
        %v415 = vpop.xlane.xlu0 %414
        %416 = vadd.xlane.f32.xlu0 %v389
        %v417 = vpop.xlane.xlu0 %416
        %418 = vadd.xlane.f32.xlu0 %v390
        %v419 = vpop.xlane.xlu0 %418
        %420 = vadd.xlane.f32.xlu0 %v391
        %v421 = vpop.xlane.xlu0 %420
        %422 = vadd.xlane.f32.xlu0 %v392
        %v423 = vpop.xlane.xlu0 %422
        %424 = vadd.xlane.f32.xlu0 %v393
        %v425 = vpop.xlane.xlu0 %424
        %v426 = vlaneseq
        %v427 = vshrl.u32 %v426, 7
        %v428 = vadd.s32 %v427, 8
        %v429 = vmax.f32 %v395, %v397
        %v430 = vrot.slane %v429, 4
        %v431 = vmax.f32 %v429, %v430
        %v432 = vrot.slane %v431, 2
        %v433 = vmax.f32 %v431, %v432
        %v434 = vrot.slane %v433, 1
        %v435 = vmax.f32 %v433, %v434
        %v436 = vmax.f32 %v399, %v401
        %v437 = vrot.slane %v436, 4
        %v438 = vmax.f32 %v436, %v437
        %v439 = vrot.slane %v438, 2
        %v440 = vmax.f32 %v438, %v439
        %v441 = vrot.slane %v440, 1
        %v442 = vmax.f32 %v440, %v441
        %v443 = vmax.f32 %v403, %v405
        %v444 = vrot.slane %v443, 4
        %v445 = vmax.f32 %v443, %v444
        %v446 = vrot.slane %v445, 2
        %v447 = vmax.f32 %v445, %v446
        %v448 = vrot.slane %v447, 1
        %v449 = vmax.f32 %v447, %v448
        %v450 = vmax.f32 %v407, %v409
        %v451 = vrot.slane %v450, 4
        %v452 = vmax.f32 %v450, %v451
        %v453 = vrot.slane %v452, 2
        %v454 = vmax.f32 %v452, %v453
        %v455 = vrot.slane %v454, 1
        %v456 = vmax.f32 %v454, %v455
        %v457 = vmax.f32 %v411, %v413
        %v458 = vrot.slane %v457, 4
        %v459 = vmax.f32 %v457, %v458
        %v460 = vrot.slane %v459, 2
        %v461 = vmax.f32 %v459, %v460
        %v462 = vrot.slane %v461, 1
        %v463 = vmax.f32 %v461, %v462
        %v464 = vmax.f32 %v415, %v417
        %v465 = vrot.slane %v464, 4
        %v466 = vmax.f32 %v464, %v465
        %v467 = vrot.slane %v466, 2
        %v468 = vmax.f32 %v466, %v467
        %v469 = vrot.slane %v468, 1
        %v470 = vmax.f32 %v468, %v469
        %v471 = vmax.f32 %v419, %v421
        %v472 = vrot.slane %v471, 4
        %v473 = vmax.f32 %v471, %v472
        %v474 = vrot.slane %v473, 2
        %v475 = vmax.f32 %v473, %v474
        %v476 = vrot.slane %v475, 1
        %v477 = vmax.f32 %v475, %v476
        %v478 = vmax.f32 %v423, %v425
        %v479 = vrot.slane %v478, 4
        %v480 = vmax.f32 %v478, %v479
        %v481 = vrot.slane %v480, 2
        %v482 = vmax.f32 %v480, %v481
        %v483 = vrot.slane %v482, 1
        %v484 = vmax.f32 %v482, %v483
        %vm485 = vcmp.eq.f32.partialorder %v395, %v435
        %vm486 = vcmp.eq.f32.partialorder %v397, %v435
        %vm487 = vcmp.eq.f32.partialorder %v399, %v442
        %vm488 = vcmp.eq.f32.partialorder %v401, %v442
        %vm489 = vcmp.eq.f32.partialorder %v403, %v449
        %vm490 = vcmp.eq.f32.partialorder %v405, %v449
        %vm491 = vcmp.eq.f32.partialorder %v407, %v456
        %vm492 = vcmp.eq.f32.partialorder %v409, %v456
        %vm493 = vcmp.eq.f32.partialorder %v411, %v463
        %vm494 = vcmp.eq.f32.partialorder %v413, %v463
        %vm495 = vcmp.eq.f32.partialorder %v415, %v470
        %vm496 = vcmp.eq.f32.partialorder %v417, %v470
        %vm497 = vcmp.eq.f32.partialorder %v419, %v477
        %vm498 = vcmp.eq.f32.partialorder %v421, %v477
        %vm499 = vcmp.eq.f32.partialorder %v423, %v484
        %vm500 = vcmp.eq.f32.partialorder %v425, %v484
        %v501 = vsel %vm485, %v427, 16
        %v502 = vsel %vm486, %v428, 16
        %v503 = vsel %vm487, %v427, 16
        %v504 = vsel %vm488, %v428, 16
        %v505 = vsel %vm489, %v427, 16
        %v506 = vsel %vm490, %v428, 16
        %v507 = vsel %vm491, %v427, 16
        %v508 = vsel %vm492, %v428, 16
        %v509 = vsel %vm493, %v427, 16
        %v510 = vsel %vm494, %v428, 16
        %v511 = vsel %vm495, %v427, 16
        %v512 = vsel %vm496, %v428, 16
        %v513 = vsel %vm497, %v427, 16
        %v514 = vsel %vm498, %v428, 16
        %v515 = vsel %vm499, %v427, 16
        %v516 = vsel %vm500, %v428, 16
        %vm517 = vcmp.lt.s32.totalorder %v501, %v502
        %v518 = vsel %vm517, %v501, %v502
        %v519 = vrot.slane %v518, 4
        %vm520 = vcmp.lt.s32.totalorder %v518, %v519
        %v521 = vsel %vm520, %v518, %v519
        %v522 = vrot.slane %v521, 2
        %vm523 = vcmp.lt.s32.totalorder %v521, %v522
        %v524 = vsel %vm523, %v521, %v522
        %v525 = vrot.slane %v524, 1
        %vm526 = vcmp.lt.s32.totalorder %v524, %v525
        %v527 = vsel %vm526, %v524, %v525
        %vm528 = vcmp.lt.s32.totalorder %v503, %v504
        %v529 = vsel %vm528, %v503, %v504
        %v530 = vrot.slane %v529, 4
        %vm531 = vcmp.lt.s32.totalorder %v529, %v530
        %v532 = vsel %vm531, %v529, %v530
        %v533 = vrot.slane %v532, 2
        %vm534 = vcmp.lt.s32.totalorder %v532, %v533
        %v535 = vsel %vm534, %v532, %v533
        %v536 = vrot.slane %v535, 1
        %vm537 = vcmp.lt.s32.totalorder %v535, %v536
        %v538 = vsel %vm537, %v535, %v536
        %vm539 = vcmp.lt.s32.totalorder %v505, %v506
        %v540 = vsel %vm539, %v505, %v506
        %v541 = vrot.slane %v540, 4
        %vm542 = vcmp.lt.s32.totalorder %v540, %v541
        %v543 = vsel %vm542, %v540, %v541
        %v544 = vrot.slane %v543, 2
        %vm545 = vcmp.lt.s32.totalorder %v543, %v544
        %v546 = vsel %vm545, %v543, %v544
        %v547 = vrot.slane %v546, 1
        %vm548 = vcmp.lt.s32.totalorder %v546, %v547
        %v549 = vsel %vm548, %v546, %v547
        %vm550 = vcmp.lt.s32.totalorder %v507, %v508
        %v551 = vsel %vm550, %v507, %v508
        %v552 = vrot.slane %v551, 4
        %vm553 = vcmp.lt.s32.totalorder %v551, %v552
        %v554 = vsel %vm553, %v551, %v552
        %v555 = vrot.slane %v554, 2
        %vm556 = vcmp.lt.s32.totalorder %v554, %v555
        %v557 = vsel %vm556, %v554, %v555
        %v558 = vrot.slane %v557, 1
        %vm559 = vcmp.lt.s32.totalorder %v557, %v558
        %v560 = vsel %vm559, %v557, %v558
        %vm561 = vcmp.lt.s32.totalorder %v509, %v510
        %v562 = vsel %vm561, %v509, %v510
        %v563 = vrot.slane %v562, 4
        %vm564 = vcmp.lt.s32.totalorder %v562, %v563
        %v565 = vsel %vm564, %v562, %v563
        %v566 = vrot.slane %v565, 2
        %vm567 = vcmp.lt.s32.totalorder %v565, %v566
        %v568 = vsel %vm567, %v565, %v566
        %v569 = vrot.slane %v568, 1
        %vm570 = vcmp.lt.s32.totalorder %v568, %v569
        %v571 = vsel %vm570, %v568, %v569
        %vm572 = vcmp.lt.s32.totalorder %v511, %v512
        %v573 = vsel %vm572, %v511, %v512
        %v574 = vrot.slane %v573, 4
        %vm575 = vcmp.lt.s32.totalorder %v573, %v574
        %v576 = vsel %vm575, %v573, %v574
        %v577 = vrot.slane %v576, 2
        %vm578 = vcmp.lt.s32.totalorder %v576, %v577
        %v579 = vsel %vm578, %v576, %v577
        %v580 = vrot.slane %v579, 1
        %vm581 = vcmp.lt.s32.totalorder %v579, %v580
        %v582 = vsel %vm581, %v579, %v580
        %vm583 = vcmp.lt.s32.totalorder %v513, %v514
        %v584 = vsel %vm583, %v513, %v514
        %v585 = vrot.slane %v584, 4
        %vm586 = vcmp.lt.s32.totalorder %v584, %v585
        %v587 = vsel %vm586, %v584, %v585
        %v588 = vrot.slane %v587, 2
        %vm589 = vcmp.lt.s32.totalorder %v587, %v588
        %v590 = vsel %vm589, %v587, %v588
        %v591 = vrot.slane %v590, 1
        %vm592 = vcmp.lt.s32.totalorder %v590, %v591
        %v593 = vsel %vm592, %v590, %v591
        %vm594 = vcmp.lt.s32.totalorder %v515, %v516
        %v595 = vsel %vm594, %v515, %v516
        %v596 = vrot.slane %v595, 4
        %vm597 = vcmp.lt.s32.totalorder %v595, %v596
        %v598 = vsel %vm597, %v595, %v596
        %v599 = vrot.slane %v598, 2
        %vm600 = vcmp.lt.s32.totalorder %v598, %v599
        %v601 = vsel %vm600, %v598, %v599
        %v602 = vrot.slane %v601, 1
        %vm603 = vcmp.lt.s32.totalorder %v601, %v602
        %v604 = vsel %vm603, %v601, %v602
        %vm605 = vcmp.eq.s32.totalorder %v427, %v527
        %vm606 = vcmp.eq.s32.totalorder %v428, %v527
        %vm607 = vcmp.eq.s32.totalorder %v427, %v538
        %vm608 = vcmp.eq.s32.totalorder %v428, %v538
        %vm609 = vcmp.eq.s32.totalorder %v427, %v549
        %vm610 = vcmp.eq.s32.totalorder %v428, %v549
        %vm611 = vcmp.eq.s32.totalorder %v427, %v560
        %vm612 = vcmp.eq.s32.totalorder %v428, %v560
        %vm613 = vcmp.eq.s32.totalorder %v427, %v571
        %vm614 = vcmp.eq.s32.totalorder %v428, %v571
        %vm615 = vcmp.eq.s32.totalorder %v427, %v582
        %vm616 = vcmp.eq.s32.totalorder %v428, %v582
        %vm617 = vcmp.eq.s32.totalorder %v427, %v593
        %vm618 = vcmp.eq.s32.totalorder %v428, %v593
        %vm619 = vcmp.eq.s32.totalorder %v427, %v604
        %vm620 = vcmp.eq.s32.totalorder %v428, %v604
        %v621 = vsel %vm605, 1, 0
        %v622 = vsel %vm606, 1, 0
        %v623 = vsel %vm607, 1, 0
        %v624 = vsel %vm608, 1, 0
        %v625 = vsel %vm609, 1, 0
        %v626 = vsel %vm610, 1, 0
        %v627 = vsel %vm611, 1, 0
        %v628 = vsel %vm612, 1, 0
        %v629 = vsel %vm613, 1, 0
        %v630 = vsel %vm614, 1, 0
        %v631 = vsel %vm615, 1, 0
        %v632 = vsel %vm616, 1, 0
        %v633 = vsel %vm617, 1, 0
        %v634 = vsel %vm618, 1, 0
        %v635 = vsel %vm619, 1, 0
        %v636 = vsel %vm620, 1, 0
        %v637 = vcvt.s32.f32 %v621
        %v638 = vcvt.s32.f32 %v622
        %v639 = vcvt.s32.f32 %v623
        %v640 = vcvt.s32.f32 %v624
        %v641 = vcvt.s32.f32 %v625
        %v642 = vcvt.s32.f32 %v626
        %v643 = vcvt.s32.f32 %v627
        %v644 = vcvt.s32.f32 %v628
        %v645 = vcvt.s32.f32 %v629
        %v646 = vcvt.s32.f32 %v630
        %v647 = vcvt.s32.f32 %v631
        %v648 = vcvt.s32.f32 %v632
        %v649 = vcvt.s32.f32 %v633
        %v650 = vcvt.s32.f32 %v634
        %v651 = vcvt.s32.f32 %v635
        %v652 = vcvt.s32.f32 %v636
        %v653 = vmul.f32 %v355, %v637
        %v654 = vmul.f32 %v356, %v638
        %v655 = vmul.f32 %v357, %v639
        %v656 = vmul.f32 %v358, %v640
        %v657 = vmul.f32 %v359, %v641
        %v658 = vmul.f32 %v360, %v642
        %v659 = vmul.f32 %v361, %v643
        %v660 = vmul.f32 %v362, %v644
        %v661 = vmul.f32 %v363, %v645
        %v662 = vmul.f32 %v364, %v646
        %v663 = vmul.f32 %v365, %v647
        %v664 = vmul.f32 %v366, %v648
        %v665 = vmul.f32 %v367, %v649
        %v666 = vmul.f32 %v368, %v650
        %v667 = vmul.f32 %v369, %v651
        %v668 = vmul.f32 %v370, %v652
        %v669 = vadd.f32 %v653, %v654
        %v670 = vrot.slane %v669, 4
        %v671 = vadd.f32 %v669, %v670
        %v672 = vrot.slane %v671, 2
        %v673 = vadd.f32 %v671, %v672
        %v674 = vrot.slane %v673, 1
        %v675 = vadd.f32 %v673, %v674
        %v676 = vadd.f32 %v655, %v656
        %v677 = vrot.slane %v676, 4
        %v678 = vadd.f32 %v676, %v677
        %v679 = vrot.slane %v678, 2
        %v680 = vadd.f32 %v678, %v679
        %v681 = vrot.slane %v680, 1
        %v682 = vadd.f32 %v680, %v681
        %v683 = vadd.f32 %v657, %v658
        %v684 = vrot.slane %v683, 4
        %v685 = vadd.f32 %v683, %v684
        %v686 = vrot.slane %v685, 2
        %v687 = vadd.f32 %v685, %v686
        %v688 = vrot.slane %v687, 1
        %v689 = vadd.f32 %v687, %v688
        %v690 = vadd.f32 %v659, %v660
        %v691 = vrot.slane %v690, 4
        %v692 = vadd.f32 %v690, %v691
        %v693 = vrot.slane %v692, 2
        %v694 = vadd.f32 %v692, %v693
        %v695 = vrot.slane %v694, 1
        %v696 = vadd.f32 %v694, %v695
        %v697 = vadd.f32 %v661, %v662
        %v698 = vrot.slane %v697, 4
        %v699 = vadd.f32 %v697, %v698
        %v700 = vrot.slane %v699, 2
        %v701 = vadd.f32 %v699, %v700
        %v702 = vrot.slane %v701, 1
        %v703 = vadd.f32 %v701, %v702
        %v704 = vadd.f32 %v663, %v664
        %v705 = vrot.slane %v704, 4
        %v706 = vadd.f32 %v704, %v705
        %v707 = vrot.slane %v706, 2
        %v708 = vadd.f32 %v706, %v707
        %v709 = vrot.slane %v708, 1
        %v710 = vadd.f32 %v708, %v709
        %v711 = vadd.f32 %v665, %v666
        %v712 = vrot.slane %v711, 4
        %v713 = vadd.f32 %v711, %v712
        %v714 = vrot.slane %v713, 2
        %v715 = vadd.f32 %v713, %v714
        %v716 = vrot.slane %v715, 1
        %v717 = vadd.f32 %v715, %v716
        %v718 = vadd.f32 %v667, %v668
        %v719 = vrot.slane %v718, 4
        %v720 = vadd.f32 %v718, %v719
        %v721 = vrot.slane %v720, 2
        %v722 = vadd.f32 %v720, %v721
        %v723 = vrot.slane %v722, 1
        %v724 = vadd.f32 %v722, %v723
        %725 = vadd.xlane.f32.xlu0 %v355
        %v726 = vpop.xlane.xlu0 %725
        %727 = vadd.xlane.f32.xlu0 %v356
        %v728 = vpop.xlane.xlu0 %727
        %729 = vadd.xlane.f32.xlu0 %v357
        %v730 = vpop.xlane.xlu0 %729
        %731 = vadd.xlane.f32.xlu0 %v358
        %v732 = vpop.xlane.xlu0 %731
        %733 = vadd.xlane.f32.xlu0 %v359
        %v734 = vpop.xlane.xlu0 %733
        %735 = vadd.xlane.f32.xlu0 %v360
        %v736 = vpop.xlane.xlu0 %735
        %737 = vadd.xlane.f32.xlu0 %v361
        %v738 = vpop.xlane.xlu0 %737
        %739 = vadd.xlane.f32.xlu0 %v362
        %v740 = vpop.xlane.xlu0 %739
        %741 = vadd.xlane.f32.xlu0 %v363
        %v742 = vpop.xlane.xlu0 %741
        %743 = vadd.xlane.f32.xlu0 %v364
        %v744 = vpop.xlane.xlu0 %743
        %745 = vadd.xlane.f32.xlu0 %v365
        %v746 = vpop.xlane.xlu0 %745
        %747 = vadd.xlane.f32.xlu0 %v366
        %v748 = vpop.xlane.xlu0 %747
        %749 = vadd.xlane.f32.xlu0 %v367
        %v750 = vpop.xlane.xlu0 %749
        %751 = vadd.xlane.f32.xlu0 %v368
        %v752 = vpop.xlane.xlu0 %751
        %753 = vadd.xlane.f32.xlu0 %v369
        %v754 = vpop.xlane.xlu0 %753
        %755 = vadd.xlane.f32.xlu0 %v370
        %v756 = vpop.xlane.xlu0 %755
        %v757 = vrcp.pop 128.0
        %v758 = vmul.f32 %v726, %v757
        %v759 = vmul.f32 %v728, %v757
        %v760 = vmul.f32 %v730, %v757
        %v761 = vmul.f32 %v732, %v757
        %v762 = vmul.f32 %v734, %v757
        %v763 = vmul.f32 %v736, %v757
        %v764 = vmul.f32 %v738, %v757
        %v765 = vmul.f32 %v740, %v757
        %v766 = vmul.f32 %v742, %v757
        %v767 = vmul.f32 %v744, %v757
        %v768 = vmul.f32 %v746, %v757
        %v769 = vmul.f32 %v748, %v757
        %v770 = vmul.f32 %v750, %v757
        %v771 = vmul.f32 %v752, %v757
        %v772 = vmul.f32 %v754, %v757
        %v773 = vmul.f32 %v756, %v757
        %v774 = vsub.f32 %v355, %v758
        %v775 = vsub.f32 %v356, %v759
        %v776 = vsub.f32 %v357, %v760
        %v777 = vsub.f32 %v358, %v761
        %v778 = vsub.f32 %v359, %v762
        %v779 = vsub.f32 %v360, %v763
        %v780 = vsub.f32 %v361, %v764
        %v781 = vsub.f32 %v362, %v765
        %v782 = vsub.f32 %v363, %v766
        %v783 = vsub.f32 %v364, %v767
        %v784 = vsub.f32 %v365, %v768
        %v785 = vsub.f32 %v366, %v769
        %v786 = vsub.f32 %v367, %v770
        %v787 = vsub.f32 %v368, %v771
        %v788 = vsub.f32 %v369, %v772
        %v789 = vsub.f32 %v370, %v773
        %v790 = vmul.f32 %v774, %v774
        %v791 = vmul.f32 %v775, %v775
        %v792 = vmul.f32 %v776, %v776
        %v793 = vmul.f32 %v777, %v777
        %v794 = vmul.f32 %v778, %v778
        %v795 = vmul.f32 %v779, %v779
        %v796 = vmul.f32 %v780, %v780
        %v797 = vmul.f32 %v781, %v781
        %v798 = vmul.f32 %v782, %v782
        %v799 = vmul.f32 %v783, %v783
        %v800 = vmul.f32 %v784, %v784
        %v801 = vmul.f32 %v785, %v785
        %v802 = vmul.f32 %v786, %v786
        %v803 = vmul.f32 %v787, %v787
        %v804 = vmul.f32 %v788, %v788
        %v805 = vmul.f32 %v789, %v789
        %806 = vadd.xlane.f32.xlu0 %v790
        %v807 = vpop.xlane.xlu0 %806
        %808 = vadd.xlane.f32.xlu0 %v791
        %v809 = vpop.xlane.xlu0 %808
        %810 = vadd.xlane.f32.xlu0 %v792
        %v811 = vpop.xlane.xlu0 %810
        %812 = vadd.xlane.f32.xlu0 %v793
        %v813 = vpop.xlane.xlu0 %812
        %814 = vadd.xlane.f32.xlu0 %v794
        %v815 = vpop.xlane.xlu0 %814
        %816 = vadd.xlane.f32.xlu0 %v795
        %v817 = vpop.xlane.xlu0 %816
        %818 = vadd.xlane.f32.xlu0 %v796
        %v819 = vpop.xlane.xlu0 %818
        %820 = vadd.xlane.f32.xlu0 %v797
        %v821 = vpop.xlane.xlu0 %820
        %822 = vadd.xlane.f32.xlu0 %v798
        %v823 = vpop.xlane.xlu0 %822
        %824 = vadd.xlane.f32.xlu0 %v799
        %v825 = vpop.xlane.xlu0 %824
        %826 = vadd.xlane.f32.xlu0 %v800
        %v827 = vpop.xlane.xlu0 %826
        %828 = vadd.xlane.f32.xlu0 %v801
        %v829 = vpop.xlane.xlu0 %828
        %830 = vadd.xlane.f32.xlu0 %v802
        %v831 = vpop.xlane.xlu0 %830
        %832 = vadd.xlane.f32.xlu0 %v803
        %v833 = vpop.xlane.xlu0 %832
        %834 = vadd.xlane.f32.xlu0 %v804
        %v835 = vpop.xlane.xlu0 %834
        %836 = vadd.xlane.f32.xlu0 %v805
        %v837 = vpop.xlane.xlu0 %836
        %v838 = vmul.f32 %v807, %v757
        %v839 = vmul.f32 %v809, %v757
        %v840 = vmul.f32 %v811, %v757
        %v841 = vmul.f32 %v813, %v757
        %v842 = vmul.f32 %v815, %v757
        %v843 = vmul.f32 %v817, %v757
        %v844 = vmul.f32 %v819, %v757
        %v845 = vmul.f32 %v821, %v757
        %v846 = vmul.f32 %v823, %v757
        %v847 = vmul.f32 %v825, %v757
        %v848 = vmul.f32 %v827, %v757
        %v849 = vmul.f32 %v829, %v757
        %v850 = vmul.f32 %v831, %v757
        %v851 = vmul.f32 %v833, %v757
        %v852 = vmul.f32 %v835, %v757
        %v853 = vmul.f32 %v837, %v757
        %v854 = vadd.f32 %v838, 1e-05
        %v855 = vadd.f32 %v839, 1e-05
        %v856 = vadd.f32 %v840, 1e-05
        %v857 = vadd.f32 %v841, 1e-05
        %v858 = vadd.f32 %v842, 1e-05
        %v859 = vadd.f32 %v843, 1e-05
        %v860 = vadd.f32 %v844, 1e-05
        %v861 = vadd.f32 %v845, 1e-05
        %v862 = vadd.f32 %v846, 1e-05
        %v863 = vadd.f32 %v847, 1e-05
        %v864 = vadd.f32 %v848, 1e-05
        %v865 = vadd.f32 %v849, 1e-05
        %v866 = vadd.f32 %v850, 1e-05
        %v867 = vadd.f32 %v851, 1e-05
        %v868 = vadd.f32 %v852, 1e-05
        %v869 = vadd.f32 %v853, 1e-05
        %v870 = vrsqrt.pop %v854
        %v871 = vrsqrt.pop %v855
        %v872 = vrsqrt.pop %v856
        %v873 = vrsqrt.pop %v857
        %v874 = vrsqrt.pop %v858
        %v875 = vrsqrt.pop %v859
        %v876 = vrsqrt.pop %v860
        %v877 = vrsqrt.pop %v861
        %v878 = vrsqrt.pop %v862
        %v879 = vrsqrt.pop %v863
        %v880 = vrsqrt.pop %v864
        %v881 = vrsqrt.pop %v865
        %v882 = vrsqrt.pop %v866
        %v883 = vrsqrt.pop %v867
        %v884 = vrsqrt.pop %v868
        %v885 = vrsqrt.pop %v869
        %v886 = vmul.f32 %v774, %v870
        %v887 = vmul.f32 %v775, %v871
        %v888 = vmul.f32 %v776, %v872
        %v889 = vmul.f32 %v777, %v873
        %v890 = vmul.f32 %v778, %v874
        %v891 = vmul.f32 %v779, %v875
        %v892 = vmul.f32 %v780, %v876
        %v893 = vmul.f32 %v781, %v877
        %v894 = vmul.f32 %v782, %v878
        %v895 = vmul.f32 %v783, %v879
        %v896 = vmul.f32 %v784, %v880
        %v897 = vmul.f32 %v785, %v881
        %v898 = vmul.f32 %v786, %v882
        %v899 = vmul.f32 %v787, %v883
        %v900 = vmul.f32 %v788, %v884
        %v901 = vmul.f32 %v789, %v885
        %v902 = vlaneseq
        %v903 = vshrl.u32 %v902, 7
        %v904 = vsub.s32 0, %v903
        %v905 = vrot.slane %v372, %v904
        %v906 = vmul.f32 %v886, %v905
        %v907 = vmul.f32 %v887, %v905
        %v908 = vmul.f32 %v888, %v905
        %v909 = vmul.f32 %v889, %v905
        %v910 = vmul.f32 %v890, %v905
        %v911 = vmul.f32 %v891, %v905
        %v912 = vmul.f32 %v892, %v905
        %v913 = vmul.f32 %v893, %v905
        %v914 = vmul.f32 %v894, %v905
        %v915 = vmul.f32 %v895, %v905
        %v916 = vmul.f32 %v896, %v905
        %v917 = vmul.f32 %v897, %v905
        %v918 = vmul.f32 %v898, %v905
        %v919 = vmul.f32 %v899, %v905
        %v920 = vmul.f32 %v900, %v905
        %v921 = vmul.f32 %v901, %v905
        %v922 = vlaneseq
        %v923 = vshrl.u32 %v922, 7
        %v924 = vsub.s32 0, %v923
        %v925 = vrot.slane %v373, %v924
        %v926 = vadd.f32 %v906, %v925
        %v927 = vadd.f32 %v907, %v925
        %v928 = vadd.f32 %v908, %v925
        %v929 = vadd.f32 %v909, %v925
        %v930 = vadd.f32 %v910, %v925
        %v931 = vadd.f32 %v911, %v925
        %v932 = vadd.f32 %v912, %v925
        %v933 = vadd.f32 %v913, %v925
        %v934 = vadd.f32 %v914, %v925
        %v935 = vadd.f32 %v915, %v925
        %v936 = vadd.f32 %v916, %v925
        %v937 = vadd.f32 %v917, %v925
        %v938 = vadd.f32 %v918, %v925
        %v939 = vadd.f32 %v919, %v925
        %v940 = vadd.f32 %v920, %v925
        %v941 = vadd.f32 %v921, %v925
        %v942 = vld [vmem:[#allocation7] sm:$0xff]
        %v943 = vld [vmem:[#allocation7 + $0x8] sm:$0xff]
        %v944 = vld [vmem:[#allocation7 + $0x10] sm:$0xff]
        %v945 = vld [vmem:[#allocation7 + $0x18] sm:$0xff]
        %v946 = vld [vmem:[#allocation7 + $0x20] sm:$0xff]
        %v947 = vld [vmem:[#allocation7 + $0x28] sm:$0xff]
        %v948 = vld [vmem:[#allocation7 + $0x30] sm:$0xff]
        %v949 = vld [vmem:[#allocation7 + $0x38] sm:$0xff]
        %v950 = vld [vmem:[#allocation7 + $0x40] sm:$0xff]
        %v951 = vld [vmem:[#allocation7 + $0x48] sm:$0xff]
        %v952 = vld [vmem:[#allocation7 + $0x50] sm:$0xff]
        %v953 = vld [vmem:[#allocation7 + $0x58] sm:$0xff]
        %v954 = vld [vmem:[#allocation7 + $0x60] sm:$0xff]
        %v955 = vld [vmem:[#allocation7 + $0x68] sm:$0xff]
        %v956 = vld [vmem:[#allocation7 + $0x70] sm:$0xff]
        %v957 = vld [vmem:[#allocation7 + $0x78] sm:$0xff]
        %v958 = vld [vmem:[%s3] sm:$0x1]
        %v960 = vlaneseq
        %v961 = vshrl.u32 %v960, 7
        %v962 = vsub.s32 0, %v961
        %v963 = vrot.slane %v958, %v962
        %965 = vmatprep.subr.mxu0 0.0
        %966 = vmatpush1.msra.mxu0 %v957
        %967 = vmatprep.subr.mxu0 0.0
        %968 = vmatpush1.msra.mxu0 %v956
        %969 = vmatprep.subr.mxu0 0.0
        %970 = vmatpush1.msra.mxu0 %v955
        %971 = vmatprep.subr.mxu0 0.0
        %972 = vmatpush1.msra.mxu0 %v954
        %973 = vmatprep.subr.mxu0 0.0
        %974 = vmatpush1.msra.mxu0 %v953
        %975 = vmatprep.subr.mxu0 0.0
        %976 = vmatpush1.msra.mxu0 %v952
        %977 = vmatprep.subr.mxu0 0.0
        %978 = vmatpush1.msra.mxu0 %v951
        %979 = vmatprep.subr.mxu0 0.0
        %980 = vmatpush1.msra.mxu0 %v950
        %981 = vmatprep.subr.mxu0 0.0
        %982 = vmatpush1.msra.mxu0 %v949
        %983 = vmatprep.subr.mxu0 0.0
        %984 = vmatpush1.msra.mxu0 %v948
        %985 = vmatprep.subr.mxu0 0.0
        %986 = vmatpush1.msra.mxu0 %v947
        %987 = vmatprep.subr.mxu0 0.0
        %988 = vmatpush1.msra.mxu0 %v946
        %989 = vmatprep.subr.mxu0 0.0
        %990 = vmatpush1.msra.mxu0 %v945
        %991 = vmatprep.subr.mxu0 0.0
        %992 = vmatpush1.msra.mxu0 %v944
        %993 = vmatprep.subr.mxu0 0.0
        %994 = vmatpush1.msra.mxu0 %v943
        %995 = vmatprep.subr.mxu0 0.0
        %996 = vmatpush1.msra.mxu0 %v942
        %997 = vmatprep.subr.mxu0 0.0
        %998 = vmatpush2.msra.mxu0 0.0
        %999 = vmatprep.subr.mxu0 0.0
        %1000 = vmatpush2.msra.mxu0 0.0
        %1001 = vmatprep.subr.mxu0 0.0
        %1002 = vmatpush2.msra.mxu0 0.0
        %1003 = vmatprep.subr.mxu0 0.0
        %1004 = vmatpush2.msra.mxu0 0.0
        %1005 = vmatprep.subr.mxu0 0.0
        %1006 = vmatpush2.msra.mxu0 0.0
        %1007 = vmatprep.subr.mxu0 0.0
        %1008 = vmatpush2.msra.mxu0 0.0
        %1009 = vmatprep.subr.mxu0 0.0
        %1010 = vmatpush2.msra.mxu0 0.0
        %1011 = vmatprep.subr.mxu0 0.0
        %1012 = vmatpush2.msra.mxu0 0.0
        %1013 = vmatprep.subr.mxu0 0.0
        %1014 = vmatpush2.msra.mxu0 0.0
        %1015 = vmatprep.subr.mxu0 0.0
        %1016 = vmatpush2.msra.mxu0 0.0
        %1017 = vmatprep.subr.mxu0 0.0
        %1018 = vmatpush2.msra.mxu0 0.0
        %1019 = vmatprep.subr.mxu0 0.0
        %1020 = vmatpush2.msra.mxu0 0.0
        %1021 = vmatprep.subr.mxu0 0.0
        %1022 = vmatpush2.msra.mxu0 0.0
        %1023 = vmatprep.subr.mxu0 0.0
        %1024 = vmatpush2.msra.mxu0 0.0
        %1025 = vmatprep.subr.mxu0 0.0
        %1026 = vmatpush2.msra.mxu0 0.0
        %1027 = vmatprep.subr.mxu0 0.0
        %1028 = vmatpush2.msra.mxu0 0.0
        %1029 = vmatprep.mubr.f32.mxu0 0.0
        %1030 = vmatmul.mubr.f32.gmra.mxu0 %v926
        %v1031 = vpop.f32.mrf.mxu0
        %v1032 = vadd.f32 %v963, %v1031
        %v1033 = vpop.f32.mrf.mxu0
        %1034 = vmatprep.mubr.f32.mxu0 0.0
        %1035 = vmatmul.mubr.f32.gmra.mxu0 %v927
        %v1036 = vpop.f32.mrf.mxu0
        %v1037 = vadd.f32 %v963, %v1036
        %v1038 = vpop.f32.mrf.mxu0
        %1039 = vmatprep.mubr.f32.mxu0 0.0
        %1040 = vmatmul.mubr.f32.gmra.mxu0 %v928
        %v1041 = vpop.f32.mrf.mxu0
        %v1042 = vadd.f32 %v963, %v1041
        %v1043 = vpop.f32.mrf.mxu0
        %1044 = vmatprep.mubr.f32.mxu0 0.0
        %1045 = vmatmul.mubr.f32.gmra.mxu0 %v929
        %v1046 = vpop.f32.mrf.mxu0
        %v1047 = vadd.f32 %v963, %v1046
        %v1048 = vpop.f32.mrf.mxu0
        %1049 = vmatprep.mubr.f32.mxu0 0.0
        %1050 = vmatmul.mubr.f32.gmra.mxu0 %v930
        %v1051 = vpop.f32.mrf.mxu0
        %v1052 = vadd.f32 %v963, %v1051
        %v1053 = vpop.f32.mrf.mxu0
        %1054 = vmatprep.mubr.f32.mxu0 0.0
        %1055 = vmatmul.mubr.f32.gmra.mxu0 %v931
        %v1056 = vpop.f32.mrf.mxu0
        %v1057 = vadd.f32 %v963, %v1056
        %v1058 = vpop.f32.mrf.mxu0
        %1059 = vmatprep.mubr.f32.mxu0 0.0
        %1060 = vmatmul.mubr.f32.gmra.mxu0 %v932
        %v1061 = vpop.f32.mrf.mxu0
        %v1062 = vadd.f32 %v963, %v1061
        %v1063 = vpop.f32.mrf.mxu0
        %1064 = vmatprep.mubr.f32.mxu0 0.0
        %1065 = vmatmul.mubr.f32.gmra.mxu0 %v933
        %v1066 = vpop.f32.mrf.mxu0
        %v1067 = vadd.f32 %v963, %v1066
        %v1068 = vpop.f32.mrf.mxu0
        %1069 = vmatprep.mubr.f32.mxu0 0.0
        %1070 = vmatmul.mubr.f32.gmra.mxu0 %v934
        %v1071 = vpop.f32.mrf.mxu0
        %v1072 = vadd.f32 %v963, %v1071
        %v1073 = vpop.f32.mrf.mxu0
        %1074 = vmatprep.mubr.f32.mxu0 0.0
        %1075 = vmatmul.mubr.f32.gmra.mxu0 %v935
        %v1076 = vpop.f32.mrf.mxu0
        %v1077 = vadd.f32 %v963, %v1076
        %v1078 = vpop.f32.mrf.mxu0
        %1079 = vmatprep.mubr.f32.mxu0 0.0
        %1080 = vmatmul.mubr.f32.gmra.mxu0 %v936
        %v1081 = vpop.f32.mrf.mxu0
        %v1082 = vadd.f32 %v963, %v1081
        %v1083 = vpop.f32.mrf.mxu0
        %1084 = vmatprep.mubr.f32.mxu0 0.0
        %1085 = vmatmul.mubr.f32.gmra.mxu0 %v937
        %v1086 = vpop.f32.mrf.mxu0
        %v1087 = vadd.f32 %v963, %v1086
        %v1088 = vpop.f32.mrf.mxu0
        %1089 = vmatprep.mubr.f32.mxu0 0.0
        %1090 = vmatmul.mubr.f32.gmra.mxu0 %v938
        %v1091 = vpop.f32.mrf.mxu0
        %v1092 = vadd.f32 %v963, %v1091
        %v1093 = vpop.f32.mrf.mxu0
        %1094 = vmatprep.mubr.f32.mxu0 0.0
        %1095 = vmatmul.mubr.f32.gmra.mxu0 %v939
        %v1096 = vpop.f32.mrf.mxu0
        %v1097 = vadd.f32 %v963, %v1096
        %v1098 = vpop.f32.mrf.mxu0
        %1099 = vmatprep.mubr.f32.mxu0 0.0
        %1100 = vmatmul.mubr.f32.gmra.mxu0 %v940
        %v1101 = vpop.f32.mrf.mxu0
        %v1102 = vadd.f32 %v963, %v1101
        %v1103 = vpop.f32.mrf.mxu0
        %1104 = vmatprep.mubr.f32.mxu0 0.0
        %1105 = vmatmul.mubr.f32.gmra.mxu0 %v941
        %v1106 = vpop.f32.mrf.mxu0
        %v1107 = vadd.f32 %v963, %v1106
        %v1108 = vpop.f32.mrf.mxu0
        %1109 = vdwg.mxu0
        %v1110 = vmul.f32 %v1032, %v637
        %v1111 = vmul.f32 %v1037, %v638
        %v1112 = vmul.f32 %v1042, %v639
        %v1113 = vmul.f32 %v1047, %v640
        %v1114 = vmul.f32 %v1052, %v641
        %v1115 = vmul.f32 %v1057, %v642
        %v1116 = vmul.f32 %v1062, %v643
        %v1117 = vmul.f32 %v1067, %v644
        %v1118 = vmul.f32 %v1072, %v645
        %v1119 = vmul.f32 %v1077, %v646
        %v1120 = vmul.f32 %v1082, %v647
        %v1121 = vmul.f32 %v1087, %v648
        %v1122 = vmul.f32 %v1092, %v649
        %v1123 = vmul.f32 %v1097, %v650
        %v1124 = vmul.f32 %v1102, %v651
        %v1125 = vmul.f32 %v1107, %v652
        %v1126 = vadd.f32 %v1110, %v1111
        %v1127 = vrot.slane %v1126, 4
        %v1128 = vadd.f32 %v1126, %v1127
        %v1129 = vrot.slane %v1128, 2
        %v1130 = vadd.f32 %v1128, %v1129
        %v1131 = vrot.slane %v1130, 1
        %v1132 = vadd.f32 %v1130, %v1131
        %v1133 = vadd.f32 %v1112, %v1113
        %v1134 = vrot.slane %v1133, 4
        %v1135 = vadd.f32 %v1133, %v1134
        %v1136 = vrot.slane %v1135, 2
        %v1137 = vadd.f32 %v1135, %v1136
        %v1138 = vrot.slane %v1137, 1
        %v1139 = vadd.f32 %v1137, %v1138
        %v1140 = vadd.f32 %v1114, %v1115
        %v1141 = vrot.slane %v1140, 4
        %v1142 = vadd.f32 %v1140, %v1141
        %v1143 = vrot.slane %v1142, 2
        %v1144 = vadd.f32 %v1142, %v1143
        %v1145 = vrot.slane %v1144, 1
        %v1146 = vadd.f32 %v1144, %v1145
        %v1147 = vadd.f32 %v1116, %v1117
        %v1148 = vrot.slane %v1147, 4
        %v1149 = vadd.f32 %v1147, %v1148
        %v1150 = vrot.slane %v1149, 2
        %v1151 = vadd.f32 %v1149, %v1150
        %v1152 = vrot.slane %v1151, 1
        %v1153 = vadd.f32 %v1151, %v1152
        %v1154 = vadd.f32 %v1118, %v1119
        %v1155 = vrot.slane %v1154, 4
        %v1156 = vadd.f32 %v1154, %v1155
        %v1157 = vrot.slane %v1156, 2
        %v1158 = vadd.f32 %v1156, %v1157
        %v1159 = vrot.slane %v1158, 1
        %v1160 = vadd.f32 %v1158, %v1159
        %v1161 = vadd.f32 %v1120, %v1121
        %v1162 = vrot.slane %v1161, 4
        %v1163 = vadd.f32 %v1161, %v1162
        %v1164 = vrot.slane %v1163, 2
        %v1165 = vadd.f32 %v1163, %v1164
        %v1166 = vrot.slane %v1165, 1
        %v1167 = vadd.f32 %v1165, %v1166
        %v1168 = vadd.f32 %v1122, %v1123
        %v1169 = vrot.slane %v1168, 4
        %v1170 = vadd.f32 %v1168, %v1169
        %v1171 = vrot.slane %v1170, 2
        %v1172 = vadd.f32 %v1170, %v1171
        %v1173 = vrot.slane %v1172, 1
        %v1174 = vadd.f32 %v1172, %v1173
        %v1175 = vadd.f32 %v1124, %v1125
        %v1176 = vrot.slane %v1175, 4
        %v1177 = vadd.f32 %v1175, %v1176
        %v1178 = vrot.slane %v1177, 2
        %v1179 = vadd.f32 %v1177, %v1178
        %v1180 = vrot.slane %v1179, 1
        %v1181 = vadd.f32 %v1179, %v1180
        %v1182 = vmul.f32 %v1132, 0.088388346
        %v1183 = vmul.f32 %v1139, 0.088388346
        %v1184 = vmul.f32 %v1146, 0.088388346
        %v1185 = vmul.f32 %v1153, 0.088388346
        %v1186 = vmul.f32 %v1160, 0.088388346
        %v1187 = vmul.f32 %v1167, 0.088388346
        %v1188 = vmul.f32 %v1174, 0.088388346
        %v1189 = vmul.f32 %v1181, 0.088388346
        %v1190 = vmul.f32 %v1032, %v1182
        %v1191 = vmul.f32 %v1037, %v1182
        %v1192 = vmul.f32 %v1042, %v1183
        %v1193 = vmul.f32 %v1047, %v1183
        %v1194 = vmul.f32 %v1052, %v1184
        %v1195 = vmul.f32 %v1057, %v1184
        %v1196 = vmul.f32 %v1062, %v1185
        %v1197 = vmul.f32 %v1067, %v1185
        %v1198 = vmul.f32 %v1072, %v1186
        %v1199 = vmul.f32 %v1077, %v1186
        %v1200 = vmul.f32 %v1082, %v1187
        %v1201 = vmul.f32 %v1087, %v1187
        %v1202 = vmul.f32 %v1092, %v1188
        %v1203 = vmul.f32 %v1097, %v1188
        %v1204 = vmul.f32 %v1102, %v1189
        %v1205 = vmul.f32 %v1107, %v1189
        %1206 = vadd.xlane.f32.xlu0 %v1190
        %v1207 = vpop.xlane.xlu0 %1206
        %1208 = vadd.xlane.f32.xlu0 %v1191
        %v1209 = vpop.xlane.xlu0 %1208
        %1210 = vadd.xlane.f32.xlu0 %v1192
        %v1211 = vpop.xlane.xlu0 %1210
        %1212 = vadd.xlane.f32.xlu0 %v1193
        %v1213 = vpop.xlane.xlu0 %1212
        %1214 = vadd.xlane.f32.xlu0 %v1194
        %v1215 = vpop.xlane.xlu0 %1214
        %1216 = vadd.xlane.f32.xlu0 %v1195
        %v1217 = vpop.xlane.xlu0 %1216
        %1218 = vadd.xlane.f32.xlu0 %v1196
        %v1219 = vpop.xlane.xlu0 %1218
        %1220 = vadd.xlane.f32.xlu0 %v1197
        %v1221 = vpop.xlane.xlu0 %1220
        %1222 = vadd.xlane.f32.xlu0 %v1198
        %v1223 = vpop.xlane.xlu0 %1222
        %1224 = vadd.xlane.f32.xlu0 %v1199
        %v1225 = vpop.xlane.xlu0 %1224
        %1226 = vadd.xlane.f32.xlu0 %v1200
        %v1227 = vpop.xlane.xlu0 %1226
        %1228 = vadd.xlane.f32.xlu0 %v1201
        %v1229 = vpop.xlane.xlu0 %1228
        %1230 = vadd.xlane.f32.xlu0 %v1202
        %v1231 = vpop.xlane.xlu0 %1230
        %1232 = vadd.xlane.f32.xlu0 %v1203
        %v1233 = vpop.xlane.xlu0 %1232
        %1234 = vadd.xlane.f32.xlu0 %v1204
        %v1235 = vpop.xlane.xlu0 %1234
        %1236 = vadd.xlane.f32.xlu0 %v1205
        %v1237 = vpop.xlane.xlu0 %1236
        %v1238 = vlaneseq
        %v1239 = vand.u32 %v1238, 127
        %vm1240 = vcmp.eq.s32.totalorder %v1239, %v527
        %vm1241 = vcmp.eq.s32.totalorder %v1239, %v538
        %vm1242 = vcmp.eq.s32.totalorder %v1239, %v549
        %vm1243 = vcmp.eq.s32.totalorder %v1239, %v560
        %vm1244 = vcmp.eq.s32.totalorder %v1239, %v571
        %vm1245 = vcmp.eq.s32.totalorder %v1239, %v582
        %vm1246 = vcmp.eq.s32.totalorder %v1239, %v593
        %vm1247 = vcmp.eq.s32.totalorder %v1239, %v604
        %v1248 = vsel %vm1240, 1, 0
        %v1249 = vsel %vm1241, 1, 0
        %v1250 = vsel %vm1242, 1, 0
        %v1251 = vsel %vm1243, 1, 0
        %v1252 = vsel %vm1244, 1, 0
        %v1253 = vsel %vm1245, 1, 0
        %v1254 = vsel %vm1246, 1, 0
        %v1255 = vsel %vm1247, 1, 0
        %v1256 = vcvt.s32.f32 %v1248
        %v1257 = vcvt.s32.f32 %v1249
        %v1258 = vcvt.s32.f32 %v1250
        %v1259 = vcvt.s32.f32 %v1251
        %v1260 = vcvt.s32.f32 %v1252
        %v1261 = vcvt.s32.f32 %v1253
        %v1262 = vcvt.s32.f32 %v1254
        %v1263 = vcvt.s32.f32 %v1255
        %v1264 = vld [vmem:[#allocation8] sm:$0xff]
        %v1265 = vld [vmem:[#allocation8 + $0x8] sm:$0xff]
        %v1266 = vmul.f32 %v1264, %v1256
        %v1267 = vmul.f32 %v1265, %v1256
        %v1268 = vmul.f32 %v1264, %v1257
        %v1269 = vmul.f32 %v1265, %v1257
        %v1270 = vmul.f32 %v1264, %v1258
        %v1271 = vmul.f32 %v1265, %v1258
        %v1272 = vmul.f32 %v1264, %v1259
        %v1273 = vmul.f32 %v1265, %v1259
        %v1274 = vmul.f32 %v1264, %v1260
        %v1275 = vmul.f32 %v1265, %v1260
        %v1276 = vmul.f32 %v1264, %v1261
        %v1277 = vmul.f32 %v1265, %v1261
        %v1278 = vmul.f32 %v1264, %v1262
        %v1279 = vmul.f32 %v1265, %v1262
        %v1280 = vmul.f32 %v1264, %v1263
        %v1281 = vmul.f32 %v1265, %v1263
        %vm1282 = vcmask 130048
        %v1283 = vsel %vm1282, %v1266, 0.0
        %1284 = vadd.xlane.f32.xlu0 %v1283
        %v1285 = vpop.xlane.xlu0 %1284
        %v1286 = vsel %vm1282, %v1267, 0.0
        %1287 = vadd.xlane.f32.xlu0 %v1286
        %v1288 = vpop.xlane.xlu0 %1287
        %v1289 = vsel %vm1282, %v1268, 0.0
        %1290 = vadd.xlane.f32.xlu0 %v1289
        %v1291 = vpop.xlane.xlu0 %1290
        %v1292 = vsel %vm1282, %v1269, 0.0
        %1293 = vadd.xlane.f32.xlu0 %v1292
        %v1294 = vpop.xlane.xlu0 %1293
        %v1295 = vsel %vm1282, %v1270, 0.0
        %1296 = vadd.xlane.f32.xlu0 %v1295
        %v1297 = vpop.xlane.xlu0 %1296
        %v1298 = vsel %vm1282, %v1271, 0.0
        %1299 = vadd.xlane.f32.xlu0 %v1298
        %v1300 = vpop.xlane.xlu0 %1299
        %v1301 = vsel %vm1282, %v1272, 0.0
        %1302 = vadd.xlane.f32.xlu0 %v1301
        %v1303 = vpop.xlane.xlu0 %1302
        %v1304 = vsel %vm1282, %v1273, 0.0
        %1305 = vadd.xlane.f32.xlu0 %v1304
        %v1306 = vpop.xlane.xlu0 %1305
        %v1307 = vsel %vm1282, %v1274, 0.0
        %1308 = vadd.xlane.f32.xlu0 %v1307
        %v1309 = vpop.xlane.xlu0 %1308
        %v1310 = vsel %vm1282, %v1275, 0.0
        %1311 = vadd.xlane.f32.xlu0 %v1310
        %v1312 = vpop.xlane.xlu0 %1311
        %v1313 = vsel %vm1282, %v1276, 0.0
        %1314 = vadd.xlane.f32.xlu0 %v1313
        %v1315 = vpop.xlane.xlu0 %1314
        %v1316 = vsel %vm1282, %v1277, 0.0
        %1317 = vadd.xlane.f32.xlu0 %v1316
        %v1318 = vpop.xlane.xlu0 %1317
        %v1319 = vsel %vm1282, %v1278, 0.0
        %1320 = vadd.xlane.f32.xlu0 %v1319
        %v1321 = vpop.xlane.xlu0 %1320
        %v1322 = vsel %vm1282, %v1279, 0.0
        %1323 = vadd.xlane.f32.xlu0 %v1322
        %v1324 = vpop.xlane.xlu0 %1323
        %v1325 = vsel %vm1282, %v1280, 0.0
        %1326 = vadd.xlane.f32.xlu0 %v1325
        %v1327 = vpop.xlane.xlu0 %1326
        %v1328 = vsel %vm1282, %v1281, 0.0
        %1329 = vadd.xlane.f32.xlu0 %v1328
        %v1330 = vpop.xlane.xlu0 %1329
        %v1331 = vadd.f32 %v1207, %v1285
        %v1332 = vadd.f32 %v1209, %v1288
        %v1333 = vadd.f32 %v1211, %v1291
        %v1334 = vadd.f32 %v1213, %v1294
        %v1335 = vadd.f32 %v1215, %v1297
        %v1336 = vadd.f32 %v1217, %v1300
        %v1337 = vadd.f32 %v1219, %v1303
        %v1338 = vadd.f32 %v1221, %v1306
        %v1339 = vadd.f32 %v1223, %v1309
        %v1340 = vadd.f32 %v1225, %v1312
        %v1341 = vadd.f32 %v1227, %v1315
        %v1342 = vadd.f32 %v1229, %v1318
        %v1343 = vadd.f32 %v1231, %v1321
        %v1344 = vadd.f32 %v1233, %v1324
        %v1345 = vadd.f32 %v1235, %v1327
        %v1346 = vadd.f32 %v1237, %v1330
        %v1347 = vmax.f32 %v1331, %v1332
        %v1348 = vrot.slane %v1347, 4
        %v1349 = vmax.f32 %v1347, %v1348
        %v1350 = vrot.slane %v1349, 2
        %v1351 = vmax.f32 %v1349, %v1350
        %v1352 = vrot.slane %v1351, 1
        %v1353 = vmax.f32 %v1351, %v1352
        %v1354 = vmax.f32 %v1333, %v1334
        %v1355 = vrot.slane %v1354, 4
        %v1356 = vmax.f32 %v1354, %v1355
        %v1357 = vrot.slane %v1356, 2
        %v1358 = vmax.f32 %v1356, %v1357
        %v1359 = vrot.slane %v1358, 1
        %v1360 = vmax.f32 %v1358, %v1359
        %v1361 = vmax.f32 %v1335, %v1336
        %v1362 = vrot.slane %v1361, 4
        %v1363 = vmax.f32 %v1361, %v1362
        %v1364 = vrot.slane %v1363, 2
        %v1365 = vmax.f32 %v1363, %v1364
        %v1366 = vrot.slane %v1365, 1
        %v1367 = vmax.f32 %v1365, %v1366
        %v1368 = vmax.f32 %v1337, %v1338
        %v1369 = vrot.slane %v1368, 4
        %v1370 = vmax.f32 %v1368, %v1369
        %v1371 = vrot.slane %v1370, 2
        %v1372 = vmax.f32 %v1370, %v1371
        %v1373 = vrot.slane %v1372, 1
        %v1374 = vmax.f32 %v1372, %v1373
        %v1375 = vmax.f32 %v1339, %v1340
        %v1376 = vrot.slane %v1375, 4
        %v1377 = vmax.f32 %v1375, %v1376
        %v1378 = vrot.slane %v1377, 2
        %v1379 = vmax.f32 %v1377, %v1378
        %v1380 = vrot.slane %v1379, 1
        %v1381 = vmax.f32 %v1379, %v1380
        %v1382 = vmax.f32 %v1341, %v1342
        %v1383 = vrot.slane %v1382, 4
        %v1384 = vmax.f32 %v1382, %v1383
        %v1385 = vrot.slane %v1384, 2
        %v1386 = vmax.f32 %v1384, %v1385
        %v1387 = vrot.slane %v1386, 1
        %v1388 = vmax.f32 %v1386, %v1387
        %v1389 = vmax.f32 %v1343, %v1344
        %v1390 = vrot.slane %v1389, 4
        %v1391 = vmax.f32 %v1389, %v1390
        %v1392 = vrot.slane %v1391, 2
        %v1393 = vmax.f32 %v1391, %v1392
        %v1394 = vrot.slane %v1393, 1
        %v1395 = vmax.f32 %v1393, %v1394
        %v1396 = vmax.f32 %v1345, %v1346
        %v1397 = vrot.slane %v1396, 4
        %v1398 = vmax.f32 %v1396, %v1397
        %v1399 = vrot.slane %v1398, 2
        %v1400 = vmax.f32 %v1398, %v1399
        %v1401 = vrot.slane %v1400, 1
        %v1402 = vmax.f32 %v1400, %v1401
        %v1403 = vsub.f32 %v1331, %v1353
        %v1404 = vsub.f32 %v1332, %v1353
        %v1405 = vsub.f32 %v1333, %v1360
        %v1406 = vsub.f32 %v1334, %v1360
        %v1407 = vsub.f32 %v1335, %v1367
        %v1408 = vsub.f32 %v1336, %v1367
        %v1409 = vsub.f32 %v1337, %v1374
        %v1410 = vsub.f32 %v1338, %v1374
        %v1411 = vsub.f32 %v1339, %v1381
        %v1412 = vsub.f32 %v1340, %v1381
        %v1413 = vsub.f32 %v1341, %v1388
        %v1414 = vsub.f32 %v1342, %v1388
        %v1415 = vsub.f32 %v1343, %v1395
        %v1416 = vsub.f32 %v1344, %v1395
        %v1417 = vsub.f32 %v1345, %v1402
        %v1418 = vsub.f32 %v1346, %v1402
        %v1419 = vmul.f32 %v1403, 1.442695
        %v1420 = vpow.pop %v1419
        %v1421 = vmul.f32 %v1404, 1.442695
        %v1422 = vpow.pop %v1421
        %v1423 = vmul.f32 %v1405, 1.442695
        %v1424 = vpow.pop %v1423
        %v1425 = vmul.f32 %v1406, 1.442695
        %v1426 = vpow.pop %v1425
        %v1427 = vmul.f32 %v1407, 1.442695
        %v1428 = vpow.pop %v1427
        %v1429 = vmul.f32 %v1408, 1.442695
        %v1430 = vpow.pop %v1429
        %v1431 = vmul.f32 %v1409, 1.442695
        %v1432 = vpow.pop %v1431
        %v1433 = vmul.f32 %v1410, 1.442695
        %v1434 = vpow.pop %v1433
        %v1435 = vmul.f32 %v1411, 1.442695
        %v1436 = vpow.pop %v1435
        %v1437 = vmul.f32 %v1412, 1.442695
        %v1438 = vpow.pop %v1437
        %v1439 = vmul.f32 %v1413, 1.442695
        %v1440 = vpow.pop %v1439
        %v1441 = vmul.f32 %v1414, 1.442695
        %v1442 = vpow.pop %v1441
        %v1443 = vmul.f32 %v1415, 1.442695
        %v1444 = vpow.pop %v1443
        %v1445 = vmul.f32 %v1416, 1.442695
        %v1446 = vpow.pop %v1445
        %v1447 = vmul.f32 %v1417, 1.442695
        %v1448 = vpow.pop %v1447
        %v1449 = vmul.f32 %v1418, 1.442695
        %v1450 = vpow.pop %v1449
        %v1451 = vadd.f32 %v1420, %v1422
        %v1452 = vrot.slane %v1451, 4
        %v1453 = vadd.f32 %v1451, %v1452
        %v1454 = vrot.slane %v1453, 2
        %v1455 = vadd.f32 %v1453, %v1454
        %v1456 = vrot.slane %v1455, 1
        %v1457 = vadd.f32 %v1455, %v1456
        %v1458 = vadd.f32 %v1424, %v1426
        %v1459 = vrot.slane %v1458, 4
        %v1460 = vadd.f32 %v1458, %v1459
        %v1461 = vrot.slane %v1460, 2
        %v1462 = vadd.f32 %v1460, %v1461
        %v1463 = vrot.slane %v1462, 1
        %v1464 = vadd.f32 %v1462, %v1463
        %v1465 = vadd.f32 %v1428, %v1430
        %v1466 = vrot.slane %v1465, 4
        %v1467 = vadd.f32 %v1465, %v1466
        %v1468 = vrot.slane %v1467, 2
        %v1469 = vadd.f32 %v1467, %v1468
        %v1470 = vrot.slane %v1469, 1
        %v1471 = vadd.f32 %v1469, %v1470
        %v1472 = vadd.f32 %v1432, %v1434
        %v1473 = vrot.slane %v1472, 4
        %v1474 = vadd.f32 %v1472, %v1473
        %v1475 = vrot.slane %v1474, 2
        %v1476 = vadd.f32 %v1474, %v1475
        %v1477 = vrot.slane %v1476, 1
        %v1478 = vadd.f32 %v1476, %v1477
        %v1479 = vadd.f32 %v1436, %v1438
        %v1480 = vrot.slane %v1479, 4
        %v1481 = vadd.f32 %v1479, %v1480
        %v1482 = vrot.slane %v1481, 2
        %v1483 = vadd.f32 %v1481, %v1482
        %v1484 = vrot.slane %v1483, 1
        %v1485 = vadd.f32 %v1483, %v1484
        %v1486 = vadd.f32 %v1440, %v1442
        %v1487 = vrot.slane %v1486, 4
        %v1488 = vadd.f32 %v1486, %v1487
        %v1489 = vrot.slane %v1488, 2
        %v1490 = vadd.f32 %v1488, %v1489
        %v1491 = vrot.slane %v1490, 1
        %v1492 = vadd.f32 %v1490, %v1491
        %v1493 = vadd.f32 %v1444, %v1446
        %v1494 = vrot.slane %v1493, 4
        %v1495 = vadd.f32 %v1493, %v1494
        %v1496 = vrot.slane %v1495, 2
        %v1497 = vadd.f32 %v1495, %v1496
        %v1498 = vrot.slane %v1497, 1
        %v1499 = vadd.f32 %v1497, %v1498
        %v1500 = vadd.f32 %v1448, %v1450
        %v1501 = vrot.slane %v1500, 4
        %v1502 = vadd.f32 %v1500, %v1501
        %v1503 = vrot.slane %v1502, 2
        %v1504 = vadd.f32 %v1502, %v1503
        %v1505 = vrot.slane %v1504, 1
        %v1506 = vadd.f32 %v1504, %v1505
        %v1507 = vrcp.pop %v1457
        %v1508 = vrcp.pop %v1464
        %v1509 = vrcp.pop %v1471
        %v1510 = vrcp.pop %v1478
        %v1511 = vrcp.pop %v1485
        %v1512 = vrcp.pop %v1492
        %v1513 = vrcp.pop %v1499
        %v1514 = vrcp.pop %v1506
        %v1515 = vmul.f32 %v1420, %v1507
        %v1516 = vmul.f32 %v1422, %v1507
        %v1517 = vmul.f32 %v1424, %v1508
        %v1518 = vmul.f32 %v1426, %v1508
        %v1519 = vmul.f32 %v1428, %v1509
        %v1520 = vmul.f32 %v1430, %v1509
        %v1521 = vmul.f32 %v1432, %v1510
        %v1522 = vmul.f32 %v1434, %v1510
        %v1523 = vmul.f32 %v1436, %v1511
        %v1524 = vmul.f32 %v1438, %v1511
        %v1525 = vmul.f32 %v1440, %v1512
        %v1526 = vmul.f32 %v1442, %v1512
        %v1527 = vmul.f32 %v1444, %v1513
        %v1528 = vmul.f32 %v1446, %v1513
        %v1529 = vmul.f32 %v1448, %v1514
        %v1530 = vmul.f32 %v1450, %v1514
        %v1531 = vmul.f32 %v1515, %v926
        %v1532 = vmul.f32 %v1516, %v927
        %v1533 = vmul.f32 %v1517, %v928
        %v1534 = vmul.f32 %v1518, %v929
        %v1535 = vmul.f32 %v1519, %v930
        %v1536 = vmul.f32 %v1520, %v931
        %v1537 = vmul.f32 %v1521, %v932
        %v1538 = vmul.f32 %v1522, %v933
        %v1539 = vmul.f32 %v1523, %v934
        %v1540 = vmul.f32 %v1524, %v935
        %v1541 = vmul.f32 %v1525, %v936
        %v1542 = vmul.f32 %v1526, %v937
        %v1543 = vmul.f32 %v1527, %v938
        %v1544 = vmul.f32 %v1528, %v939
        %v1545 = vmul.f32 %v1529, %v940
        %v1546 = vmul.f32 %v1530, %v941
        %v1547 = vadd.f32 %v1531, %v1532
        %v1548 = vrot.slane %v1547, 4
        %v1549 = vadd.f32 %v1547, %v1548
        %v1550 = vrot.slane %v1549, 2
        %v1551 = vadd.f32 %v1549, %v1550
        %v1552 = vrot.slane %v1551, 1
        %v1553 = vadd.f32 %v1551, %v1552
        %v1554 = vadd.f32 %v1533, %v1534
        %v1555 = vrot.slane %v1554, 4
        %v1556 = vadd.f32 %v1554, %v1555
        %v1557 = vrot.slane %v1556, 2
        %v1558 = vadd.f32 %v1556, %v1557
        %v1559 = vrot.slane %v1558, 1
        %v1560 = vadd.f32 %v1558, %v1559
        %v1561 = vadd.f32 %v1535, %v1536
        %v1562 = vrot.slane %v1561, 4
        %v1563 = vadd.f32 %v1561, %v1562
        %v1564 = vrot.slane %v1563, 2
        %v1565 = vadd.f32 %v1563, %v1564
        %v1566 = vrot.slane %v1565, 1
        %v1567 = vadd.f32 %v1565, %v1566
        %v1568 = vadd.f32 %v1537, %v1538
        %v1569 = vrot.slane %v1568, 4
        %v1570 = vadd.f32 %v1568, %v1569
        %v1571 = vrot.slane %v1570, 2
        %v1572 = vadd.f32 %v1570, %v1571
        %v1573 = vrot.slane %v1572, 1
        %v1574 = vadd.f32 %v1572, %v1573
        %v1575 = vadd.f32 %v1539, %v1540
        %v1576 = vrot.slane %v1575, 4
        %v1577 = vadd.f32 %v1575, %v1576
        %v1578 = vrot.slane %v1577, 2
        %v1579 = vadd.f32 %v1577, %v1578
        %v1580 = vrot.slane %v1579, 1
        %v1581 = vadd.f32 %v1579, %v1580
        %v1582 = vadd.f32 %v1541, %v1542
        %v1583 = vrot.slane %v1582, 4
        %v1584 = vadd.f32 %v1582, %v1583
        %v1585 = vrot.slane %v1584, 2
        %v1586 = vadd.f32 %v1584, %v1585
        %v1587 = vrot.slane %v1586, 1
        %v1588 = vadd.f32 %v1586, %v1587
        %v1589 = vadd.f32 %v1543, %v1544
        %v1590 = vrot.slane %v1589, 4
        %v1591 = vadd.f32 %v1589, %v1590
        %v1592 = vrot.slane %v1591, 2
        %v1593 = vadd.f32 %v1591, %v1592
        %v1594 = vrot.slane %v1593, 1
        %v1595 = vadd.f32 %v1593, %v1594
        %v1596 = vadd.f32 %v1545, %v1546
        %v1597 = vrot.slane %v1596, 4
        %v1598 = vadd.f32 %v1596, %v1597
        %v1599 = vrot.slane %v1598, 2
        %v1600 = vadd.f32 %v1598, %v1599
        %v1601 = vrot.slane %v1600, 1
        %v1602 = vadd.f32 %v1600, %v1601
        %v1603 = vadd.f32 %v1553, %v675
        %v1604 = vadd.f32 %v1560, %v682
        %v1605 = vadd.f32 %v1567, %v689
        %v1606 = vadd.f32 %v1574, %v696
        %v1607 = vadd.f32 %v1581, %v703
        %v1608 = vadd.f32 %v1588, %v710
        %v1609 = vadd.f32 %v1595, %v717
        %v1610 = vadd.f32 %v1602, %v724
        %v1611 = vld [vmem:[#allocation10] sm:$0xff]
        %v1612 = vld [vmem:[#allocation10 + $0x8] sm:$0xff]
        %v1613 = vld [vmem:[#allocation10 + $0x10] sm:$0xff]
        %v1614 = vld [vmem:[#allocation10 + $0x18] sm:$0xff]
        %v1615 = vld [vmem:[#allocation10 + $0x20] sm:$0xff]
        %v1616 = vld [vmem:[#allocation10 + $0x28] sm:$0xff]
        %v1617 = vld [vmem:[#allocation10 + $0x30] sm:$0xff]
        %v1618 = vld [vmem:[#allocation10 + $0x38] sm:$0xff]
        %v1619 = vld [vmem:[#allocation10 + $0x40] sm:$0xff]
        %v1620 = vld [vmem:[#allocation10 + $0x48] sm:$0xff]
        %v1621 = vld [vmem:[#allocation10 + $0x50] sm:$0xff]
        %v1622 = vld [vmem:[#allocation10 + $0x58] sm:$0xff]
        %v1623 = vld [vmem:[#allocation10 + $0x60] sm:$0xff]
        %v1624 = vld [vmem:[#allocation10 + $0x68] sm:$0xff]
        %v1625 = vld [vmem:[#allocation10 + $0x70] sm:$0xff]
        %v1626 = vld [vmem:[#allocation10 + $0x78] sm:$0xff]
        %v1627 = vld [vmem:[%s6] sm:$0x1]
        %v1629 = vlaneseq
        %v1630 = vshrl.u32 %v1629, 7
        %v1631 = vsub.s32 0, %v1630
        %v1632 = vrot.slane %v1627, %v1631
        %vm1642 = vcmask 1041409
        %v1643 = vsel %vm1642, %v1604, %v1603
        %vm1644 = vcmask 1042434
        %v1645 = vsel %vm1644, %v1605, %v1643
        %vm1646 = vcmask 1043459
        %v1647 = vsel %vm1646, %v1606, %v1645
        %vm1648 = vcmask 1044484
        %v1649 = vsel %vm1648, %v1607, %v1647
        %vm1650 = vcmask 1045509
        %v1651 = vsel %vm1650, %v1608, %v1649
        %vm1652 = vcmask 1046534
        %v1653 = vsel %vm1652, %v1609, %v1651
        %vm1654 = vcmask 1047559
        %v1655 = vsel %vm1654, %v1610, %v1653
        %1657 = vmatprep.subr.mxu0 0.0
        %1658 = vmatpush1.msra.mxu0 %v1626
        %1659 = vmatprep.subr.mxu0 0.0
        %1660 = vmatpush1.msra.mxu0 %v1625
        %1661 = vmatprep.subr.mxu0 0.0
        %1662 = vmatpush1.msra.mxu0 %v1624
        %1663 = vmatprep.subr.mxu0 0.0
        %1664 = vmatpush1.msra.mxu0 %v1623
        %1665 = vmatprep.subr.mxu0 0.0
        %1666 = vmatpush1.msra.mxu0 %v1622
        %1667 = vmatprep.subr.mxu0 0.0
        %1668 = vmatpush1.msra.mxu0 %v1621
        %1669 = vmatprep.subr.mxu0 0.0
        %1670 = vmatpush1.msra.mxu0 %v1620
        %1671 = vmatprep.subr.mxu0 0.0
        %1672 = vmatpush1.msra.mxu0 %v1619
        %1673 = vmatprep.subr.mxu0 0.0
        %1674 = vmatpush1.msra.mxu0 %v1618
        %1675 = vmatprep.subr.mxu0 0.0
        %1676 = vmatpush1.msra.mxu0 %v1617
        %1677 = vmatprep.subr.mxu0 0.0
        %1678 = vmatpush1.msra.mxu0 %v1616
        %1679 = vmatprep.subr.mxu0 0.0
        %1680 = vmatpush1.msra.mxu0 %v1615
        %1681 = vmatprep.subr.mxu0 0.0
        %1682 = vmatpush1.msra.mxu0 %v1614
        %1683 = vmatprep.subr.mxu0 0.0
        %1684 = vmatpush1.msra.mxu0 %v1613
        %1685 = vmatprep.subr.mxu0 0.0
        %1686 = vmatpush1.msra.mxu0 %v1612
        %1687 = vmatprep.subr.mxu0 0.0
        %1688 = vmatpush1.msra.mxu0 %v1611
        %1689 = vmatprep.subr.mxu0 0.0
        %1690 = vmatpush2.msra.mxu0 0.0
        %1691 = vmatprep.subr.mxu0 0.0
        %1692 = vmatpush2.msra.mxu0 0.0
        %1693 = vmatprep.subr.mxu0 0.0
        %1694 = vmatpush2.msra.mxu0 0.0
        %1695 = vmatprep.subr.mxu0 0.0
        %1696 = vmatpush2.msra.mxu0 0.0
        %1697 = vmatprep.subr.mxu0 0.0
        %1698 = vmatpush2.msra.mxu0 0.0
        %1699 = vmatprep.subr.mxu0 0.0
        %1700 = vmatpush2.msra.mxu0 0.0
        %1701 = vmatprep.subr.mxu0 0.0
        %1702 = vmatpush2.msra.mxu0 0.0
        %1703 = vmatprep.subr.mxu0 0.0
        %1704 = vmatpush2.msra.mxu0 0.0
        %1705 = vmatprep.subr.mxu0 0.0
        %1706 = vmatpush2.msra.mxu0 0.0
        %1707 = vmatprep.subr.mxu0 0.0
        %1708 = vmatpush2.msra.mxu0 0.0
        %1709 = vmatprep.subr.mxu0 0.0
        %1710 = vmatpush2.msra.mxu0 0.0
        %1711 = vmatprep.subr.mxu0 0.0
        %1712 = vmatpush2.msra.mxu0 0.0
        %1713 = vmatprep.subr.mxu0 0.0
        %1714 = vmatpush2.msra.mxu0 0.0
        %1715 = vmatprep.subr.mxu0 0.0
        %1716 = vmatpush2.msra.mxu0 0.0
        %1717 = vmatprep.subr.mxu0 0.0
        %1718 = vmatpush2.msra.mxu0 0.0
        %1719 = vmatprep.subr.mxu0 0.0
        %1720 = vmatpush2.msra.mxu0 0.0
        %1721 = vmatprep.mubr.f32.mxu0 0.0
        %1722 = vmatmul.mubr.f32.gmra.mxu0 %v1655
        %v1723 = vpop.f32.mrf.mxu0
        %v1724 = vadd.f32 %v1632, %v1723
        %v1725 = vpop.f32.mrf.mxu0
        %1726 = vdwg.mxu0
        %1727 = vst [vmem:[%s353] sm:$0xff] %v1724
        %s1728 = sand.u32 %s186, 1
        %s1729 = scalar_lea.sflag [#allocation4], %s1728
        %s1730 = sand.u32 %s186, 1
        %s1731 = smul.addr %s1730, 8
        %s1732 = scalar_lea.vmem [#allocation11], %s1731
        // Predicated region
        $region69: #{tpu_custom_call.1} parent=47 // pred_check
          %p1733 = pneg %p196
        $region70: #{tpu_custom_call.1} parent=47 // pred_check_branch
          %1735 = sbr.rel (%p1733) target = $region72
        $region71: #{tpu_custom_call.1} parent=47 // pred_region
          %s1737 = ssub.s32 128, 128
          %1738 = vsyncadd %s1729, %s1737
          %s1739 = smul.addr %s26, 128
          %s1740 = scalar_lea.hbm %s7, %s1739
          %s1742 = sshll.u32 %s1732, 4
          %s1743 = int_to_ptr.vmem [resolvable:$true] %s1742
          %1745 = dma.vmem_to_hbm [thread:$0]  %s1743, 128, %s1740, %s1729
        $region72: #{tpu_custom_call.1} parent=47 // pred_fallthru
          _
      $region48: #{tpu_custom_call.1} parent=5 // pred_fallthru
        _
      %p1746 = scmp.le.s32.totalorder 2, %s21
      // Predicated region
      $region73: #{tpu_custom_call.1} parent=5 // pred_check
        %p1747 = pneg %p1746
      $region74: #{tpu_custom_call.1} parent=5 // pred_check_branch
        %1749 = sbr.rel (%p1747) target = $region76
      $region75: #{tpu_custom_call.1} parent=5 // pred_region
        %s1750 = ssub.s32 %s21, 2
        // Predicated region
        $region77: #{tpu_custom_call.1} parent=75 // pred_check
          %p1751 = pneg %p202
        $region78: #{tpu_custom_call.1} parent=75 // pred_check_branch
          %1753 = sbr.rel (%p1751) target = $region80
        $region79: #{tpu_custom_call.1} parent=75 // pred_region
          %s1754 = sand.u32 %s187, 1
          %s1755 = scalar_lea.sflag [#allocation4], %s1754
          %s1756 = sand.u32 %s187, 1
          %s1757 = smul.addr %s1756, 8
          %s1758 = scalar_lea.vmem [#allocation11], %s1757
          %1759 = dma.done %s1755, 128
        $region80: #{tpu_custom_call.1} parent=75 // pred_fallthru
          _
      $region76: #{tpu_custom_call.1} parent=5 // pred_fallthru
        _
    $region6: #{tpu_custom_call.1} parent=1 // loop_footer
      %s25 = sadd.s32 1, %s21
    $region7: #{tpu_custom_call.1} parent=1 // loop_footer_branch
      %20 = sbr.rel target = $region3
    $region8: #{tpu_custom_call.1} parent=1 // loop_exit
      _
    %1760 = vsyncpa [#allocation3], 1
    %s1761 = scalar_lea.sflag [#allocation3], 1
    %1762 = vsyncpa %s1761, 1
    %1763 = vsyncpa [#allocation6], 1
    %1764 = vsyncpa [#allocation9], 1
    %1765 = vsyncpa [#allocation4], 1
    %s1766 = scalar_lea.sflag [#allocation4], 1
    %1767 = vsyncpa %s1766, 1

</llo_original>
